<compile_context>
chip_gen: v5e
topology: v5e:2x2
jax: 0.10.0
libtpu: 0.0.40
codegen_flags: <defaults>
</compile_context>

<pallas_src>
import functools
import math

import jax
import jax.numpy as jnp
from jax.experimental import pallas as pl
from jax.experimental.pallas import tpu as pltpu


def _encoder_layer_kernel(eps, approx, cdt,
                          x_ref, npm_ref,
                          wq_ref, bq_ref, wk_ref, bk_ref, wv_ref, bv_ref,
                          wfc_ref, bfc_ref, g1_ref, be1_ref,
                          w1_ref, b1_ref, w2_ref, b2_ref, g2_ref, be2_ref,
                          out_ref, attn_ref, acc_ref):
    f32 = jnp.float32
    h = pl.program_id(1)
    n_head = pl.num_programs(1)

    xb = x_ref[0]                                   # (L, D), compute dtype

    @pl.when(h == 0)
    def _init():
        acc_ref[...] = jnp.zeros_like(acc_ref)

    # Per-head Q/K/V projections: full-depth (K = d_model) MXU matmuls on head-major
    # weight tiles; bias add in f32, then cast back to the MXU dtype.
    q = (jnp.dot(xb, wq_ref[0], preferred_element_type=f32) + bq_ref[0]).astype(cdt)
    k = (jnp.dot(xb, wk_ref[0], preferred_element_type=f32) + bk_ref[0]).astype(cdt)
    v = (jnp.dot(xb, wv_ref[0], preferred_element_type=f32) + bv_ref[0]).astype(cdt)

    # Scaled dot-product attention (no temperature, no mask, eval dropout).
    # A @ B^T form via dot_general (no materialized transpose).
    s = jax.lax.dot_general(q, k, (((1,), (1,)), ((), ())),
                            preferred_element_type=f32)          # (L, L) f32
    s = s - jnp.max(s, axis=-1, keepdims=True)
    e = jnp.exp(s)
    inv = pl.reciprocal(jnp.sum(e, axis=-1, keepdims=True), approx=approx)
    p = e * inv                                                  # softmax(dim=2), f32
    attn_ref[0, 0] = p

    ctx = jnp.dot(p.astype(cdt), v, preferred_element_type=f32)  # (L, d_v) f32
    # Accumulate this head's contribution to fc(concat_heads) into the f32 scratch.
    acc_ref[...] += jnp.dot(ctx.astype(cdt), wfc_ref[0], preferred_element_type=f32)

    @pl.when(h == n_head - 1)
    def _finalize():
        npm = npm_ref[0]                                         # (L, 1) f32
        # residual + LayerNorm(d_model), f32 statistics
        o = acc_ref[...] + bfc_ref[...] + xb.astype(f32)
        mu = jnp.mean(o, axis=-1, keepdims=True)
        var = jnp.mean((o - mu) ** 2, axis=-1, keepdims=True)
        o = (o - mu) * jax.lax.rsqrt(var + eps) * g1_ref[...] + be1_ref[...]
        o = o * npm                                              # output *= non_pad_mask

        # Position-wise FFN: Conv1d(D->d_inner,1) -> ReLU -> Conv1d(d_inner->D,1)
        h1 = jnp.maximum(
            jnp.dot(o.astype(cdt), w1_ref[...], preferred_element_type=f32)
            + b1_ref[...], 0.0)
        h2 = (jnp.dot(h1.astype(cdt), w2_ref[...], preferred_element_type=f32)
              + b2_ref[...])
        y = h2 + o                                               # residual
        mu2 = jnp.mean(y, axis=-1, keepdims=True)
        var2 = jnp.mean((y - mu2) ** 2, axis=-1, keepdims=True)
        y = (y - mu2) * jax.lax.rsqrt(var2 + eps) * g2_ref[...] + be2_ref[...]
        y = y * npm                                              # output *= non_pad_mask
        out_ref[0] = y.astype(out_ref.dtype)


def _nbytes(shape, dtype):
    return math.prod(shape) * jnp.dtype(dtype).itemsize


def encoder_layer(x, non_pad_mask, params, *, n_head, d_k, d_v,
                  compute_dtype=jnp.bfloat16, approx_softmax=True):
    B, L, D = x.shape
    cdt = jnp.dtype(compute_dtype)
    f32 = jnp.float32

    # Head-major weight layout so each grid step gets a contiguous per-head tile.
    def per_head_w(w, width):      # (D, H*width) -> (H, D, width)
        return w.reshape(D, n_head, width).transpose(1, 0, 2).astype(cdt)

    def per_head_b(b, width):      # (1, H*width) -> (H, 1, width)
        return b.reshape(1, n_head, width).transpose(1, 0, 2).astype(f32)

    wq_h = per_head_w(params["wq"], d_k); bq_h = per_head_b(params["bq"], d_k)
    wk_h = per_head_w(params["wk"], d_k); bk_h = per_head_b(params["bk"], d_k)
    wv_h = per_head_w(params["wv"], d_v); bv_h = per_head_b(params["bv"], d_v)
    wfc_h = params["wfc"].reshape(n_head, d_v, D).astype(cdt)

    x_c = x.astype(cdt)
    npm = non_pad_mask.astype(f32)

    head_args = (wq_h, bq_h, wk_h, bk_h, wv_h, bv_h, wfc_h)
    invariant_args = (params["bfc"].astype(f32),
                      params["ln1_g"].astype(f32), params["ln1_b"].astype(f32),
                      params["w1"].astype(cdt), params["b1"].astype(f32),
                      params["w2"].astype(cdt), params["b2"].astype(f32),
                      params["ln2_g"].astype(f32), params["ln2_b"].astype(f32))

    def head_spec(a):
        nd = a.ndim
        return pl.BlockSpec((1,) + a.shape[1:],
                            lambda b, h, _nd=nd: (h,) + (0,) * (_nd - 1))

    def full_spec(a):
        # Grid-invariant (constant index_map): DMA'd once, not re-fetched across steps.
        nd = a.ndim
        return pl.BlockSpec(a.shape, lambda b, h, _nd=nd: (0,) * _nd)

    in_specs = ([pl.BlockSpec((1, L, D), lambda b, h: (b, 0, 0)),
                 pl.BlockSpec((1, L, 1), lambda b, h: (b, 0, 0))]
                + [head_spec(a) for a in head_args]
                + [full_spec(a) for a in invariant_args])

    out_specs = [pl.BlockSpec((1, L, D), lambda b, h: (b, 0, 0)),
                 pl.BlockSpec((1, 1, L, L), lambda b, h: (h, b, 0, 0))]

    # VMEM budget from the actual block sizes (double-buffered I/O blocks + scratch).
    block_bytes = (_nbytes((1, L, D), cdt) + _nbytes((1, L, 1), f32)
                   + sum(_nbytes((1,) + a.shape[1:], a.dtype) for a in head_args)
                   + sum(_nbytes(a.shape, a.dtype) for a in invariant_args)
                   + _nbytes((1, L, D), x.dtype)
                   + _nbytes((1, 1, L, L), f32))
    vmem_limit = int(min(2 * block_bytes + _nbytes((L, D), f32) + (8 << 20),
                         100 << 20))

    kernel = functools.partial(_encoder_layer_kernel, 1e-5, approx_softmax, cdt)

    out, attn = pl.pallas_call(
        kernel,
        out_shape=(jax.ShapeDtypeStruct((B, L, D), x.dtype),
                   jax.ShapeDtypeStruct((n_head, B, L, L), jnp.float32)),
        grid_spec=pltpu.PrefetchScalarGridSpec(
            num_scalar_prefetch=0,
            grid=(B, n_head),
            in_specs=in_specs,
            out_specs=out_specs,
            scratch_shapes=[pltpu.VMEM((L, D), jnp.float32)]),
        compiler_params=pltpu.CompilerParams(
            dimension_semantics=("parallel", "arbitrary"),
            vmem_limit_bytes=vmem_limit),
    )(x_c, npm, *head_args, *invariant_args)
    # (H, B, L, L) -> (H*B, L, L), matching the PyTorch head-major layout.
    return out, attn.reshape(n_head * B, L, L)


def _layernorm(x, g, b, eps=1e-5):
    mu = jnp.mean(x, axis=-1, keepdims=True)
    var = jnp.mean((x - mu) ** 2, axis=-1, keepdims=True)
    return (x - mu) * jax.lax.rsqrt(var + eps) * g + b


def encoder_layer_reference(x, npm, p, *, n_head, d_k, d_v,
                            compute_dtype=jnp.float32):
    """Pure-JAX reference mirroring the PyTorch forward (same precision policy)."""
    B, L, D = x.shape
    cdt = jnp.dtype(compute_dtype)
    f32 = jnp.float32
    xc = x.astype(cdt)

    def mm(a, w):
        return jnp.dot(a.astype(cdt), w.astype(cdt), preferred_element_type=f32)

    q = mm(xc, p["wq"]) + p["bq"][0]
    k = mm(xc, p["wk"]) + p["bk"][0]
    v = mm(xc, p["wv"]) + p["bv"][0]
    qh = q.reshape(B, L, n_head, d_k).transpose(2, 0, 1, 3).reshape(n_head * B, L, d_k)
    kh = k.reshape(B, L, n_head, d_k).transpose(2, 0, 1, 3).reshape(n_head * B, L, d_k)
    vh = v.reshape(B, L, n_head, d_v).transpose(2, 0, 1, 3).reshape(n_head * B, L, d_v)
    s = jnp.einsum("nld,nmd->nlm", qh.astype(cdt), kh.astype(cdt),
                   preferred_element_type=f32)
    attn = jax.nn.softmax(s, axis=-1)
    ctx = jnp.einsum("nlm,nmd->nld", attn.astype(cdt), vh.astype(cdt),
                     preferred_element_type=f32)
    ctx = ctx.reshape(n_head, B, L, d_v).transpose(1, 2, 0, 3).reshape(B, L, n_head * d_v)
    o = mm(ctx, p["wfc"]) + p["bfc"][0]
    o = _layernorm(o + xc.astype(f32), p["ln1_g"][0], p["ln1_b"][0])
    o = o * npm
    h1 = jnp.maximum(mm(o, p["w1"]) + p["b1"][0], 0.0)
    h2 = mm(h1, p["w2"]) + p["b2"][0]
    y = _layernorm(h2 + o, p["ln2_g"][0], p["ln2_b"][0])
    y = y * npm
    return y, attn


if __name__ == "__main__":
    B, L = 2, 8
    d_model, d_inner, n_head, d_k, d_v = 32, 64, 4, 8, 8

    key = jax.random.PRNGKey(0)
    ks = jax.random.split(key, 12)

    def nrm(k, shape, std):
        return jax.random.normal(k, shape, jnp.float32) * std

    std_qkv = (2.0 / (d_model + d_k)) ** 0.5
    params = {
        "wq": nrm(ks[0], (d_model, n_head * d_k), std_qkv),
        "bq": nrm(ks[1], (1, n_head * d_k), 0.02),
        "wk": nrm(ks[2], (d_model, n_head * d_k), std_qkv),
        "bk": nrm(ks[3], (1, n_head * d_k), 0.02),
        "wv": nrm(ks[4], (d_model, n_head * d_v), std_qkv),
        "bv": nrm(ks[5], (1, n_head * d_v), 0.02),
        "wfc": nrm(ks[6], (n_head * d_v, d_model), (2.0 / (n_head * d_v + d_model)) ** 0.5),
        "bfc": nrm(ks[7], (1, d_model), 0.02),
        "ln1_g": jnp.ones((1, d_model), jnp.float32),
        "ln1_b": jnp.zeros((1, d_model), jnp.float32),
        "w1": nrm(ks[8], (d_model, d_inner), (1.0 / d_model) ** 0.5),
        "b1": nrm(ks[9], (1, d_inner), 0.02),
        "w2": nrm(ks[10], (d_inner, d_model), (1.0 / d_inner) ** 0.5),
        "b2": nrm(ks[11], (1, d_model), 0.02),
        "ln2_g": jnp.ones((1, d_model), jnp.float32),
        "ln2_b": jnp.zeros((1, d_model), jnp.float32),
    }

    xkey, _ = jax.random.split(key)
    x = jax.random.normal(xkey, (B, L, d_model), jnp.float32)
    non_pad_mask = jnp.ones((B, L, 1), jnp.float32).at[1, L - 2:, :].set(0.0)

    # Performance configuration (bf16 MXU matmuls + approx EUP reciprocal).
    out_bf, attn_bf = encoder_layer(x, non_pad_mask, params,
                                    n_head=n_head, d_k=d_k, d_v=d_v)
    # Exact configuration (f32 matmuls, exact reciprocal) for a tight correctness check.
    out_f32, attn_f32 = encoder_layer(x, non_pad_mask, params,
                                      n_head=n_head, d_k=d_k, d_v=d_v,
                                      compute_dtype=jnp.float32,
                                      approx_softmax=False)
    jax.block_until_ready((out_bf, attn_bf, out_f32, attn_f32))

    ref_out32, ref_attn32 = encoder_layer_reference(
        x, non_pad_mask, params, n_head=n_head, d_k=d_k, d_v=d_v,
        compute_dtype=jnp.float32)
    ref_outbf, ref_attnbf = encoder_layer_reference(
        x, non_pad_mask, params, n_head=n_head, d_k=d_k, d_v=d_v,
        compute_dtype=jnp.bfloat16)

    assert out_bf.shape == (B, L, d_model) and attn_bf.shape == (n_head * B, L, L)
    assert out_f32.shape == (B, L, d_model) and attn_f32.shape == (n_head * B, L, L)
    # Exact path matches the f32 reference tightly.
    assert jnp.allclose(out_f32, ref_out32, atol=1e-4, rtol=1e-4)
    assert jnp.allclose(attn_f32, ref_attn32, atol=1e-4, rtol=1e-4)
    # bf16 path matches a reference with the same precision policy (looser tolerance
    # accounts for the approximate EUP reciprocal in the softmax).
    assert jnp.allclose(out_bf, ref_outbf, atol=2e-2, rtol=2e-2)
    assert jnp.allclose(attn_bf, ref_attnbf, atol=2e-2, rtol=2e-2)
    print("KERNEL_OK")
</pallas_src>

<mosaic_0001>
module attributes {stable_mosaic.version = 11 : i64} {
  func.func @_encoder_layer_kernel(%arg0: i32, %arg1: i32, %arg2: memref<1x8x32xbf16, #tpu.memory_space<vmem>>, %arg3: memref<1x8x1xf32, #tpu.memory_space<vmem>>, %arg4: memref<1x32x8xbf16, #tpu.memory_space<vmem>>, %arg5: memref<1x1x8xf32, #tpu.memory_space<vmem>>, %arg6: memref<1x32x8xbf16, #tpu.memory_space<vmem>>, %arg7: memref<1x1x8xf32, #tpu.memory_space<vmem>>, %arg8: memref<1x32x8xbf16, #tpu.memory_space<vmem>>, %arg9: memref<1x1x8xf32, #tpu.memory_space<vmem>>, %arg10: memref<1x8x32xbf16, #tpu.memory_space<vmem>>, %arg11: memref<1x32xf32, #tpu.memory_space<vmem>>, %arg12: memref<1x32xf32, #tpu.memory_space<vmem>>, %arg13: memref<1x32xf32, #tpu.memory_space<vmem>>, %arg14: memref<32x64xbf16, #tpu.memory_space<vmem>>, %arg15: memref<1x64xf32, #tpu.memory_space<vmem>>, %arg16: memref<64x32xbf16, #tpu.memory_space<vmem>>, %arg17: memref<1x32xf32, #tpu.memory_space<vmem>>, %arg18: memref<1x32xf32, #tpu.memory_space<vmem>>, %arg19: memref<1x32xf32, #tpu.memory_space<vmem>>, %arg20: memref<1x8x32xf32, #tpu.memory_space<vmem>>, %arg21: memref<1x1x8x8xf32, #tpu.memory_space<vmem>>, %arg22: memref<8x32xf32, #tpu.memory_space<vmem>>) attributes {dimension_semantics = [#tpu.dimension_semantics<parallel>, #tpu.dimension_semantics<arbitrary>], iteration_bounds = array<i64: 2, 4>, scalar_prefetch = 0 : i64, scratch_operands = 1 : i64, tpu.core_type = #tpu.core_type<tc>, window_params = [{transform_indices = @transform_0, window_bounds = array<i64: 1, 8, 32>}, {transform_indices = @transform_1, window_bounds = array<i64: 1, 8, 1>}, {transform_indices = @transform_2, window_bounds = array<i64: 1, 32, 8>}, {transform_indices = @transform_3, window_bounds = array<i64: 1, 1, 8>}, {transform_indices = @transform_4, window_bounds = array<i64: 1, 32, 8>}, {transform_indices = @transform_5, window_bounds = array<i64: 1, 1, 8>}, {transform_indices = @transform_6, window_bounds = array<i64: 1, 32, 8>}, {transform_indices = @transform_7, window_bounds = array<i64: 1, 1, 8>}, {transform_indices = @transform_8, window_bounds = array<i64: 1, 8, 32>}, {pipeline_mode = #tpu.pipeline_mode<synchronous>, transform_indices = @transform_9, window_bounds = array<i64: 1, 32>}, {pipeline_mode = #tpu.pipeline_mode<synchronous>, transform_indices = @transform_10, window_bounds = array<i64: 1, 32>}, {pipeline_mode = #tpu.pipeline_mode<synchronous>, transform_indices = @transform_11, window_bounds = array<i64: 1, 32>}, {pipeline_mode = #tpu.pipeline_mode<synchronous>, transform_indices = @transform_12, window_bounds = array<i64: 32, 64>}, {pipeline_mode = #tpu.pipeline_mode<synchronous>, transform_indices = @transform_13, window_bounds = array<i64: 1, 64>}, {pipeline_mode = #tpu.pipeline_mode<synchronous>, transform_indices = @transform_14, window_bounds = array<i64: 64, 32>}, {pipeline_mode = #tpu.pipeline_mode<synchronous>, transform_indices = @transform_15, window_bounds = array<i64: 1, 32>}, {pipeline_mode = #tpu.pipeline_mode<synchronous>, transform_indices = @transform_16, window_bounds = array<i64: 1, 32>}, {pipeline_mode = #tpu.pipeline_mode<synchronous>, transform_indices = @transform_17, window_bounds = array<i64: 1, 32>}, {transform_indices = @transform_18, window_bounds = array<i64: 1, 8, 32>}, {transform_indices = @transform_19, window_bounds = array<i64: 1, 1, 8, 8>}]} {
    %c0 = arith.constant 0 : index
    %c0_0 = arith.constant 0 : index
    %c0_1 = arith.constant 0 : index
    %0 = vector.load %arg2[%c0, %c0_0, %c0_1] : memref<1x8x32xbf16, #tpu.memory_space<vmem>>, vector<1x8x32xbf16>
    %1 = vector.shape_cast %0 : vector<1x8x32xbf16> to vector<8x32xbf16>
    %c0_i32 = arith.constant 0 : i32
    %2 = arith.cmpi eq, %arg1, %c0_i32 : i32
    %3 = arith.extui %2 : i1 to i32
    %c0_i32_2 = arith.constant 0 : i32
    %4 = arith.cmpi ne, %3, %c0_i32_2 : i32
    scf.if %4 {
      %cst_40 = arith.constant 0.000000e+00 : f32
      %55 = vector.broadcast %cst_40 : f32 to vector<8x32xf32>
      %c0_41 = arith.constant 0 : index
      %c0_42 = arith.constant 0 : index
      %56 = vector.load %arg22[%c0_41, %c0_42] : memref<8x32xf32, #tpu.memory_space<vmem>>, vector<8x32xf32>
      tpu.vector_store %arg22[%c0_41, %c0_42], %55 {strides = array<i32>} : memref<8x32xf32, #tpu.memory_space<vmem>>, vector<8x32xf32>,
    } else {
    }
    %c0_3 = arith.constant 0 : index
    %c0_4 = arith.constant 0 : index
    %c0_5 = arith.constant 0 : index
    %5 = vector.load %arg4[%c0_3, %c0_4, %c0_5] : memref<1x32x8xbf16, #tpu.memory_space<vmem>>, vector<1x32x8xbf16>
    %6 = vector.shape_cast %5 : vector<1x32x8xbf16> to vector<32x8xbf16>
    %cst = arith.constant dense<0.000000e+00> : vector<8x8xf32>
    %7 = tpu.matmul %1, %6, %cst {dimension_numbers = #tpu.dot_dimension_numbers<[1], [0], [0], [1], [0, 0, 1, 1], [], []>} : vector<8x32xbf16>, vector<32x8xbf16>, vector<8x8xf32> -> vector<8x8xf32>
    %c0_6 = arith.constant 0 : index
    %c0_7 = arith.constant 0 : index
    %c0_8 = arith.constant 0 : index
    %8 = vector.load %arg5[%c0_6, %c0_7, %c0_8] : memref<1x1x8xf32, #tpu.memory_space<vmem>>, vector<1x1x8xf32>
    %9 = vector.shape_cast %8 : vector<1x1x8xf32> to vector<1x8xf32>
    %10 = vector.broadcast %9 : vector<1x8xf32> to vector<8x8xf32>
    %11 = arith.addf %7, %10 : vector<8x8xf32>
    %12 = arith.truncf %11 : vector<8x8xf32> to vector<8x8xbf16>
    %c0_9 = arith.constant 0 : index
    %c0_10 = arith.constant 0 : index
    %c0_11 = arith.constant 0 : index
    %13 = vector.load %arg6[%c0_9, %c0_10, %c0_11] : memref<1x32x8xbf16, #tpu.memory_space<vmem>>, vector<1x32x8xbf16>
    %14 = vector.shape_cast %13 : vector<1x32x8xbf16> to vector<32x8xbf16>
    %cst_12 = arith.constant dense<0.000000e+00> : vector<8x8xf32>
    %15 = tpu.matmul %1, %14, %cst_12 {dimension_numbers = #tpu.dot_dimension_numbers<[1], [0], [0], [1], [0, 0, 1, 1], [], []>} : vector<8x32xbf16>, vector<32x8xbf16>, vector<8x8xf32> -> vector<8x8xf32>
    %c0_13 = arith.constant 0 : index
    %c0_14 = arith.constant 0 : index
    %c0_15 = arith.constant 0 : index
    %16 = vector.load %arg7[%c0_13, %c0_14, %c0_15] : memref<1x1x8xf32, #tpu.memory_space<vmem>>, vector<1x1x8xf32>
    %17 = vector.shape_cast %16 : vector<1x1x8xf32> to vector<1x8xf32>
    %18 = vector.broadcast %17 : vector<1x8xf32> to vector<8x8xf32>
    %19 = arith.addf %15, %18 : vector<8x8xf32>
    %20 = arith.truncf %19 : vector<8x8xf32> to vector<8x8xbf16>
    %c0_16 = arith.constant 0 : index
    %c0_17 = arith.constant 0 : index
    %c0_18 = arith.constant 0 : index
    %21 = vector.load %arg8[%c0_16, %c0_17, %c0_18] : memref<1x32x8xbf16, #tpu.memory_space<vmem>>, vector<1x32x8xbf16>
    %22 = vector.shape_cast %21 : vector<1x32x8xbf16> to vector<32x8xbf16>
    %cst_19 = arith.constant dense<0.000000e+00> : vector<8x8xf32>
    %23 = tpu.matmul %1, %22, %cst_19 {dimension_numbers = #tpu.dot_dimension_numbers<[1], [0], [0], [1], [0, 0, 1, 1], [], []>} : vector<8x32xbf16>, vector<32x8xbf16>, vector<8x8xf32> -> vector<8x8xf32>
    %c0_20 = arith.constant 0 : index
    %c0_21 = arith.constant 0 : index
    %c0_22 = arith.constant 0 : index
    %24 = vector.load %arg9[%c0_20, %c0_21, %c0_22] : memref<1x1x8xf32, #tpu.memory_space<vmem>>, vector<1x1x8xf32>
    %25 = vector.shape_cast %24 : vector<1x1x8xf32> to vector<1x8xf32>
    %26 = vector.broadcast %25 : vector<1x8xf32> to vector<8x8xf32>
    %27 = arith.addf %23, %26 : vector<8x8xf32>
    %28 = arith.truncf %27 : vector<8x8xf32> to vector<8x8xbf16>
    %cst_23 = arith.constant dense<0.000000e+00> : vector<8x8xf32>
    %29 = tpu.matmul %12, %20, %cst_23 {dimension_numbers = #tpu.dot_dimension_numbers<[1], [1], [0], [0], [0, 0, 1, 0], [], []>} : vector<8x8xbf16>, vector<8x8xbf16>, vector<8x8xf32> -> vector<8x8xf32>
    %cst_24 = arith.constant dense<0xFF800000> : vector<8xf32>
    %30 = vector.multi_reduction <maximumf>, %29, %cst_24 [1] : vector<8x8xf32> to vector<8xf32>
    %31 = vector.shape_cast %30 : vector<8xf32> to vector<8x1xf32>
    %32 = vector.broadcast %31 : vector<8x1xf32> to vector<8x8xf32>
    %33 = arith.subf %29, %32 : vector<8x8xf32>
    %34 = math.exp %33 : vector<8x8xf32>
    %cst_25 = arith.constant dense<0.000000e+00> : vector<8xf32>
    %35 = vector.multi_reduction <add>, %34, %cst_25 [1] : vector<8x8xf32> to vector<8xf32>
    %36 = vector.shape_cast %35 : vector<8xf32> to vector<8x1xf32>
    %37 = tpu.reciprocal %36 {approx = true} : vector<8x1xf32> -> vector<8x1xf32>
    %38 = vector.broadcast %37 : vector<8x1xf32> to vector<8x8xf32>
    %39 = arith.mulf %34, %38 : vector<8x8xf32>
    %c0_26 = arith.constant 0 : index
    %c0_27 = arith.constant 0 : index
    %c0_28 = arith.constant 0 : index
    %c0_29 = arith.constant 0 : index
    %40 = vector.load %arg21[%c0_26, %c0_27, %c0_28, %c0_29] : memref<1x1x8x8xf32, #tpu.memory_space<vmem>>, vector<1x1x8x8xf32>
    %41 = vector.shape_cast %40 : vector<1x1x8x8xf32> to vector<8x8xf32>
    %42 = vector.shape_cast %39 : vector<8x8xf32> to vector<1x1x8x8xf32>
    tpu.vector_store %arg21[%c0_26, %c0_27, %c0_28, %c0_29], %42 {strides = array<i32>} : memref<1x1x8x8xf32, #tpu.memory_space<vmem>>, vector<1x1x8x8xf32>,
    %43 = arith.truncf %39 : vector<8x8xf32> to vector<8x8xbf16>
    %cst_30 = arith.constant dense<0.000000e+00> : vector<8x8xf32>
    %44 = tpu.matmul %43, %28, %cst_30 {dimension_numbers = #tpu.dot_dimension_numbers<[1], [0], [0], [1], [0, 0, 1, 1], [], []>} : vector<8x8xbf16>, vector<8x8xbf16>, vector<8x8xf32> -> vector<8x8xf32>
    %c0_31 = arith.constant 0 : index
    %c0_32 = arith.constant 0 : index
    %45 = vector.load %arg22[%c0_31, %c0_32] : memref<8x32xf32, #tpu.memory_space<vmem>>, vector<8x32xf32>
    %46 = arith.truncf %44 : vector<8x8xf32> to vector<8x8xbf16>
    %c0_33 = arith.constant 0 : index
    %c0_34 = arith.constant 0 : index
    %c0_35 = arith.constant 0 : index
    %47 = vector.load %arg10[%c0_33, %c0_34, %c0_35] : memref<1x8x32xbf16, #tpu.memory_space<vmem>>, vector<1x8x32xbf16>
    %48 = vector.shape_cast %47 : vector<1x8x32xbf16> to vector<8x32xbf16>
    %cst_36 = arith.constant dense<0.000000e+00> : vector<8x32xf32>
    %49 = tpu.matmul %46, %48, %cst_36 {dimension_numbers = #tpu.dot_dimension_numbers<[1], [0], [0], [1], [0, 0, 1, 1], [], []>} : vector<8x8xbf16>, vector<8x32xbf16>, vector<8x32xf32> -> vector<8x32xf32>
    %50 = arith.addf %45, %49 : vector<8x32xf32>
    %c0_37 = arith.constant 0 : index
    %c0_38 = arith.constant 0 : index
    %51 = vector.load %arg22[%c0_37, %c0_38] : memref<8x32xf32, #tpu.memory_space<vmem>>, vector<8x32xf32>
    tpu.vector_store %arg22[%c0_37, %c0_38], %50 {strides = array<i32>} : memref<8x32xf32, #tpu.memory_space<vmem>>, vector<8x32xf32>,
    %c3_i32 = arith.constant 3 : i32
    %52 = arith.cmpi eq, %arg1, %c3_i32 : i32
    %53 = arith.extui %52 : i1 to i32
    %c0_i32_39 = arith.constant 0 : i32
    %54 = arith.cmpi ne, %53, %c0_i32_39 : i32
    scf.if %54 {
      %c0_40 = arith.constant 0 : index
      %c0_41 = arith.constant 0 : index
      %c0_42 = arith.constant 0 : index
      %55 = vector.load %arg3[%c0_40, %c0_41, %c0_42] : memref<1x8x1xf32, #tpu.memory_space<vmem>>, vector<1x8x1xf32>
      %56 = vector.shape_cast %55 : vector<1x8x1xf32> to vector<8x1xf32>
      %c0_43 = arith.constant 0 : index
      %c0_44 = arith.constant 0 : index
      %57 = vector.load %arg22[%c0_43, %c0_44] : memref<8x32xf32, #tpu.memory_space<vmem>>, vector<8x32xf32>
      %c0_45 = arith.constant 0 : index
      %c0_46 = arith.constant 0 : index
      %58 = vector.load %arg11[%c0_45, %c0_46] : memref<1x32xf32, #tpu.memory_space<vmem>>, vector<1x32xf32>
      %59 = vector.broadcast %58 : vector<1x32xf32> to vector<8x32xf32>
      %60 = arith.addf %57, %59 : vector<8x32xf32>
      %61 = arith.extf %1 : vector<8x32xbf16> to vector<8x32xf32>
      %62 = arith.addf %60, %61 : vector<8x32xf32>
      %cst_47 = arith.constant dense<0.000000e+00> : vector<8xf32>
      %63 = vector.multi_reduction <add>, %62, %cst_47 [1] : vector<8x32xf32> to vector<8xf32>
      %64 = vector.shape_cast %63 : vector<8xf32> to vector<8x1xf32>
      %cst_48 = arith.constant 3.200000e+01 : f32
      %65 = vector.broadcast %cst_48 : f32 to vector<8x1xf32>
      %66 = arith.divf %64, %65 : vector<8x1xf32>
      %67 = vector.broadcast %66 : vector<8x1xf32> to vector<8x32xf32>
      %68 = arith.subf %62, %67 : vector<8x32xf32>
      %69 = arith.mulf %68, %68 : vector<8x32xf32>
      %cst_49 = arith.constant dense<0.000000e+00> : vector<8xf32>
      %70 = vector.multi_reduction <add>, %69, %cst_49 [1] : vector<8x32xf32> to vector<8xf32>
      %71 = vector.shape_cast %70 : vector<8xf32> to vector<8x1xf32>
      %cst_50 = arith.constant 3.200000e+01 : f32
      %72 = vector.broadcast %cst_50 : f32 to vector<8x1xf32>
      %73 = arith.divf %71, %72 : vector<8x1xf32>
      %74 = vector.broadcast %66 : vector<8x1xf32> to vector<8x32xf32>
      %75 = arith.subf %62, %74 : vector<8x32xf32>
      %cst_51 = arith.constant 9.99999974E-6 : f32
      %76 = vector.broadcast %cst_51 : f32 to vector<8x1xf32>
      %77 = arith.addf %73, %76 : vector<8x1xf32>
      %78 = math.rsqrt %77 : vector<8x1xf32>
      %79 = vector.broadcast %78 : vector<8x1xf32> to vector<8x32xf32>
      %80 = arith.mulf %75, %79 : vector<8x32xf32>
      %c0_52 = arith.constant 0 : index
      %c0_53 = arith.constant 0 : index
      %81 = vector.load %arg12[%c0_52, %c0_53] : memref<1x32xf32, #tpu.memory_space<vmem>>, vector<1x32xf32>
      %82 = vector.broadcast %81 : vector<1x32xf32> to vector<8x32xf32>
      %83 = arith.mulf %80, %82 : vector<8x32xf32>
      %c0_54 = arith.constant 0 : index
      %c0_55 = arith.constant 0 : index
      %84 = vector.load %arg13[%c0_54, %c0_55] : memref<1x32xf32, #tpu.memory_space<vmem>>, vector<1x32xf32>
      %85 = vector.broadcast %84 : vector<1x32xf32> to vector<8x32xf32>
      %86 = arith.addf %83, %85 : vector<8x32xf32>
      %87 = vector.broadcast %56 : vector<8x1xf32> to vector<8x32xf32>
      %88 = arith.mulf %86, %87 : vector<8x32xf32>
      %89 = arith.truncf %88 : vector<8x32xf32> to vector<8x32xbf16>
      %c0_56 = arith.constant 0 : index
      %c0_57 = arith.constant 0 : index
      %90 = vector.load %arg14[%c0_56, %c0_57] : memref<32x64xbf16, #tpu.memory_space<vmem>>, vector<32x64xbf16>
      %cst_58 = arith.constant dense<0.000000e+00> : vector<8x64xf32>
      %91 = tpu.matmul %89, %90, %cst_58 {dimension_numbers = #tpu.dot_dimension_numbers<[1], [0], [0], [1], [0, 0, 1, 1], [], []>} : vector<8x32xbf16>, vector<32x64xbf16>, vector<8x64xf32> -> vector<8x64xf32>
      %c0_59 = arith.constant 0 : index
      %c0_60 = arith.constant 0 : index
      %92 = vector.load %arg15[%c0_59, %c0_60] : memref<1x64xf32, #tpu.memory_space<vmem>>, vector<1x64xf32>
      %93 = vector.broadcast %92 : vector<1x64xf32> to vector<8x64xf32>
      %94 = arith.addf %91, %93 : vector<8x64xf32>
      %cst_61 = arith.constant 0.000000e+00 : f32
      %95 = vector.broadcast %cst_61 : f32 to vector<8x64xf32>
      %96 = arith.maximumf %94, %95 : vector<8x64xf32>
      %97 = arith.truncf %96 : vector<8x64xf32> to vector<8x64xbf16>
      %c0_62 = arith.constant 0 : index
      %c0_63 = arith.constant 0 : index
      %98 = vector.load %arg16[%c0_62, %c0_63] : memref<64x32xbf16, #tpu.memory_space<vmem>>, vector<64x32xbf16>
      %cst_64 = arith.constant dense<0.000000e+00> : vector<8x32xf32>
      %99 = tpu.matmul %97, %98, %cst_64 {dimension_numbers = #tpu.dot_dimension_numbers<[1], [0], [0], [1], [0, 0, 1, 1], [], []>} : vector<8x64xbf16>, vector<64x32xbf16>, vector<8x32xf32> -> vector<8x32xf32>
      %c0_65 = arith.constant 0 : index
      %c0_66 = arith.constant 0 : index
      %100 = vector.load %arg17[%c0_65, %c0_66] : memref<1x32xf32, #tpu.memory_space<vmem>>, vector<1x32xf32>
      %101 = vector.broadcast %100 : vector<1x32xf32> to vector<8x32xf32>
      %102 = arith.addf %99, %101 : vector<8x32xf32>
      %103 = arith.addf %102, %88 : vector<8x32xf32>
      %cst_67 = arith.constant dense<0.000000e+00> : vector<8xf32>
      %104 = vector.multi_reduction <add>, %103, %cst_67 [1] : vector<8x32xf32> to vector<8xf32>
      %105 = vector.shape_cast %104 : vector<8xf32> to vector<8x1xf32>
      %cst_68 = arith.constant 3.200000e+01 : f32
      %106 = vector.broadcast %cst_68 : f32 to vector<8x1xf32>
      %107 = arith.divf %105, %106 : vector<8x1xf32>
      %108 = vector.broadcast %107 : vector<8x1xf32> to vector<8x32xf32>
      %109 = arith.subf %103, %108 : vector<8x32xf32>
      %110 = arith.mulf %109, %109 : vector<8x32xf32>
      %cst_69 = arith.constant dense<0.000000e+00> : vector<8xf32>
      %111 = vector.multi_reduction <add>, %110, %cst_69 [1] : vector<8x32xf32> to vector<8xf32>
      %112 = vector.shape_cast %111 : vector<8xf32> to vector<8x1xf32>
      %cst_70 = arith.constant 3.200000e+01 : f32
      %113 = vector.broadcast %cst_70 : f32 to vector<8x1xf32>
      %114 = arith.divf %112, %113 : vector<8x1xf32>
      %115 = vector.broadcast %107 : vector<8x1xf32> to vector<8x32xf32>
      %116 = arith.subf %103, %115 : vector<8x32xf32>
      %cst_71 = arith.constant 9.99999974E-6 : f32
      %117 = vector.broadcast %cst_71 : f32 to vector<8x1xf32>
      %118 = arith.addf %114, %117 : vector<8x1xf32>
      %119 = math.rsqrt %118 : vector<8x1xf32>
      %120 = vector.broadcast %119 : vector<8x1xf32> to vector<8x32xf32>
      %121 = arith.mulf %116, %120 : vector<8x32xf32>
      %c0_72 = arith.constant 0 : index
      %c0_73 = arith.constant 0 : index
      %122 = vector.load %arg18[%c0_72, %c0_73] : memref<1x32xf32, #tpu.memory_space<vmem>>, vector<1x32xf32>
      %123 = vector.broadcast %122 : vector<1x32xf32> to vector<8x32xf32>
      %124 = arith.mulf %121, %123 : vector<8x32xf32>
      %c0_74 = arith.constant 0 : index
      %c0_75 = arith.constant 0 : index
      %125 = vector.load %arg19[%c0_74, %c0_75] : memref<1x32xf32, #tpu.memory_space<vmem>>, vector<1x32xf32>
      %126 = vector.broadcast %125 : vector<1x32xf32> to vector<8x32xf32>
      %127 = arith.addf %124, %126 : vector<8x32xf32>
      %128 = vector.broadcast %56 : vector<8x1xf32> to vector<8x32xf32>
      %129 = arith.mulf %127, %128 : vector<8x32xf32>
      %c0_76 = arith.constant 0 : index
      %c0_77 = arith.constant 0 : index
      %c0_78 = arith.constant 0 : index
      %130 = vector.load %arg20[%c0_76, %c0_77, %c0_78] : memref<1x8x32xf32, #tpu.memory_space<vmem>>, vector<1x8x32xf32>
      %131 = vector.shape_cast %130 : vector<1x8x32xf32> to vector<8x32xf32>
      %132 = vector.shape_cast %129 : vector<8x32xf32> to vector<1x8x32xf32>
      tpu.vector_store %arg20[%c0_76, %c0_77, %c0_78], %132 {strides = array<i32>} : memref<1x8x32xf32, #tpu.memory_space<vmem>>, vector<1x8x32xf32>,
    } else {
    }
    return
  }
  func.func @transform_0(%arg0: i32, %arg1: i32) -> (i32, i32, i32) {
    %c0_i32 = arith.constant 0 : i32
    %c0_i32_0 = arith.constant 0 : i32
    %c0_i32_1 = arith.constant 0 : i32
    return %arg0, %c0_i32, %c0_i32_0 : i32, i32, i32
  }
  func.func @transform_1(%arg0: i32, %arg1: i32) -> (i32, i32, i32) {
    %c0_i32 = arith.constant 0 : i32
    %c0_i32_0 = arith.constant 0 : i32
    %c0_i32_1 = arith.constant 0 : i32
    return %arg0, %c0_i32, %c0_i32_0 : i32, i32, i32
  }
  func.func @transform_2(%arg0: i32, %arg1: i32) -> (i32, i32, i32) {
    %c0_i32 = arith.constant 0 : i32
    %c0_i32_0 = arith.constant 0 : i32
    %c0_i32_1 = arith.constant 0 : i32
    return %arg1, %c0_i32, %c0_i32_0 : i32, i32, i32
  }
  func.func @transform_3(%arg0: i32, %arg1: i32) -> (i32, i32, i32) {
    %c0_i32 = arith.constant 0 : i32
    %c0_i32_0 = arith.constant 0 : i32
    %c0_i32_1 = arith.constant 0 : i32
    return %arg1, %c0_i32, %c0_i32_0 : i32, i32, i32
  }
  func.func @transform_4(%arg0: i32, %arg1: i32) -> (i32, i32, i32) {
    %c0_i32 = arith.constant 0 : i32
    %c0_i32_0 = arith.constant 0 : i32
    %c0_i32_1 = arith.constant 0 : i32
    return %arg1, %c0_i32, %c0_i32_0 : i32, i32, i32
  }
  func.func @transform_5(%arg0: i32, %arg1: i32) -> (i32, i32, i32) {
    %c0_i32 = arith.constant 0 : i32
    %c0_i32_0 = arith.constant 0 : i32
    %c0_i32_1 = arith.constant 0 : i32
    return %arg1, %c0_i32, %c0_i32_0 : i32, i32, i32
  }
  func.func @transform_6(%arg0: i32, %arg1: i32) -> (i32, i32, i32) {
    %c0_i32 = arith.constant 0 : i32
    %c0_i32_0 = arith.constant 0 : i32
    %c0_i32_1 = arith.constant 0 : i32
    return %arg1, %c0_i32, %c0_i32_0 : i32, i32, i32
  }
  func.func @transform_7(%arg0: i32, %arg1: i32) -> (i32, i32, i32) {
    %c0_i32 = arith.constant 0 : i32
    %c0_i32_0 = arith.constant 0 : i32
    %c0_i32_1 = arith.constant 0 : i32
    return %arg1, %c0_i32, %c0_i32_0 : i32, i32, i32
  }
  func.func @transform_8(%arg0: i32, %arg1: i32) -> (i32, i32, i32) {
    %c0_i32 = arith.constant 0 : i32
    %c0_i32_0 = arith.constant 0 : i32
    %c0_i32_1 = arith.constant 0 : i32
    return %arg1, %c0_i32, %c0_i32_0 : i32, i32, i32
  }
  func.func @transform_9(%arg0: i32, %arg1: i32) -> (i32, i32) {
    %c0_i32 = arith.constant 0 : i32
    %c0_i32_0 = arith.constant 0 : i32
    %c0_i32_1 = arith.constant 0 : i32
    return %c0_i32, %c0_i32_0 : i32, i32
  }
  func.func @transform_10(%arg0: i32, %arg1: i32) -> (i32, i32) {
    %c0_i32 = arith.constant 0 : i32
    %c0_i32_0 = arith.constant 0 : i32
    %c0_i32_1 = arith.constant 0 : i32
    return %c0_i32, %c0_i32_0 : i32, i32
  }
  func.func @transform_11(%arg0: i32, %arg1: i32) -> (i32, i32) {
    %c0_i32 = arith.constant 0 : i32
    %c0_i32_0 = arith.constant 0 : i32
    %c0_i32_1 = arith.constant 0 : i32
    return %c0_i32, %c0_i32_0 : i32, i32
  }
  func.func @transform_12(%arg0: i32, %arg1: i32) -> (i32, i32) {
    %c0_i32 = arith.constant 0 : i32
    %c0_i32_0 = arith.constant 0 : i32
    %c0_i32_1 = arith.constant 0 : i32
    return %c0_i32, %c0_i32_0 : i32, i32
  }
  func.func @transform_13(%arg0: i32, %arg1: i32) -> (i32, i32) {
    %c0_i32 = arith.constant 0 : i32
    %c0_i32_0 = arith.constant 0 : i32
    %c0_i32_1 = arith.constant 0 : i32
    return %c0_i32, %c0_i32_0 : i32, i32
  }
  func.func @transform_14(%arg0: i32, %arg1: i32) -> (i32, i32) {
    %c0_i32 = arith.constant 0 : i32
    %c0_i32_0 = arith.constant 0 : i32
    %c0_i32_1 = arith.constant 0 : i32
    return %c0_i32, %c0_i32_0 : i32, i32
  }
  func.func @transform_15(%arg0: i32, %arg1: i32) -> (i32, i32) {
    %c0_i32 = arith.constant 0 : i32
    %c0_i32_0 = arith.constant 0 : i32
    %c0_i32_1 = arith.constant 0 : i32
    return %c0_i32, %c0_i32_0 : i32, i32
  }
  func.func @transform_16(%arg0: i32, %arg1: i32) -> (i32, i32) {
    %c0_i32 = arith.constant 0 : i32
    %c0_i32_0 = arith.constant 0 : i32
    %c0_i32_1 = arith.constant 0 : i32
    return %c0_i32, %c0_i32_0 : i32, i32
  }
  func.func @transform_17(%arg0: i32, %arg1: i32) -> (i32, i32) {
    %c0_i32 = arith.constant 0 : i32
    %c0_i32_0 = arith.constant 0 : i32
    %c0_i32_1 = arith.constant 0 : i32
    return %c0_i32, %c0_i32_0 : i32, i32
  }
  func.func @transform_18(%arg0: i32, %arg1: i32) -> (i32, i32, i32) {
    %c0_i32 = arith.constant 0 : i32
    %c0_i32_0 = arith.constant 0 : i32
    %c0_i32_1 = arith.constant 0 : i32
    return %arg0, %c0_i32, %c0_i32_0 : i32, i32, i32
  }
  func.func @transform_19(%arg0: i32, %arg1: i32) -> (i32, i32, i32, i32) {
    %c0_i32 = arith.constant 0 : i32
    %c0_i32_0 = arith.constant 0 : i32
    %c0_i32_1 = arith.constant 0 : i32
    return %arg1, %arg0, %c0_i32, %c0_i32_0 : i32, i32, i32, i32
  }
}

</mosaic_0001>

<llo_original>
// kernel: tpu_custom_call.1
$region0: #{tpu_custom_call.1}
  #allocation0 [shape = 'u32[]', space=smem, size = 0x4, offset = 0x4, fixed_abs, tag = 'smem constant byte address 0x4 - core index']
  #allocation1 [shape = 'u32[72,128]{1,0:T(1,128)}', space=vmem, size = 0x9000, scoped, tag = 'internal scratch']
  #allocation2 [shape = 'f32[8,32]{1,0:T(8,128)}', space=vmem, size = 0x1000, scoped, tag = 'scratch operand']
  %s0 = inlined_call_operand.vmem [shape: bf16[2,8,32], index: 0, kind: input, shape index: {}]
  %s1 = inlined_call_operand.vmem [shape: f32[2,8,1], index: 1, kind: input, shape index: {}]
  %s2 = inlined_call_operand.vmem [shape: bf16[4,32,8], index: 2, kind: input, shape index: {}]
  %s3 = inlined_call_operand.vmem [shape: f32[4,1,8], index: 3, kind: input, shape index: {}]
  %s4 = inlined_call_operand.vmem [shape: bf16[4,32,8], index: 4, kind: input, shape index: {}]
  %s5 = inlined_call_operand.vmem [shape: f32[4,1,8], index: 5, kind: input, shape index: {}]
  %s6 = inlined_call_operand.vmem [shape: bf16[4,32,8], index: 6, kind: input, shape index: {}]
  %s7 = inlined_call_operand.vmem [shape: f32[4,1,8], index: 7, kind: input, shape index: {}]
  %s8 = inlined_call_operand.vmem [shape: bf16[4,8,32], index: 8, kind: input, shape index: {}]
  %s9 = inlined_call_operand.vmem [shape: f32[1,32], index: 9, kind: input, shape index: {}]
  %s10 = inlined_call_operand.vmem [shape: f32[1,32], index: 10, kind: input, shape index: {}]
  %s11 = inlined_call_operand.vmem [shape: f32[1,32], index: 11, kind: input, shape index: {}]
  %s12 = inlined_call_operand.vmem [shape: bf16[32,64], index: 12, kind: input, shape index: {}]
  %s13 = inlined_call_operand.vmem [shape: f32[1,64], index: 13, kind: input, shape index: {}]
  %s14 = inlined_call_operand.vmem [shape: bf16[64,32], index: 14, kind: input, shape index: {}]
  %s15 = inlined_call_operand.vmem [shape: f32[1,32], index: 15, kind: input, shape index: {}]
  %s16 = inlined_call_operand.vmem [shape: f32[1,32], index: 16, kind: input, shape index: {}]
  %s17 = inlined_call_operand.vmem [shape: f32[1,32], index: 17, kind: input, shape index: {}]
  %s18 = inlined_call_operand.hbm [shape: f32[2,8,32], index: 18, kind: output, shape index: {0}]
  %s19 = inlined_call_operand.hbm [shape: f32[4,2,8,8], index: 19, kind: output, shape index: {1}]
  %20 = xla_tuple %s18, %s19
  %s21 = sld [smem:[#allocation0]]
  $region121: #{tpu_custom_call.1} parent=0
    _
  %s23 = ssub.s32 1, %s21
  %s24 = scalar_select 0, %s23, %s21
  $region1: #{tpu_custom_call.1} parent=0
    #allocation3 [shape = 'u8[8192]{0}', space=vmem, size = 0x2000, scoped, tag = 'output window, operand 0']
    #allocation4 [shape = 's32[2]{0}', space=sflag, size = 0x8, scoped, tag = 'scoped memory for tpu_custom_call.1']
    #allocation5 [shape = 'u8[8192]{0}', space=vmem, size = 0x2000, scoped, tag = 'output window, operand 1']
    #allocation6 [shape = 's32[2]{0}', space=sflag, size = 0x8, scoped, tag = 'scoped memory for tpu_custom_call.1']
    %25 = vsyncpa [#allocation4], 0
    %s26 = scalar_lea.sflag [#allocation4], 1
    %27 = vsyncpa %s26, 0
    %28 = vsyncpa [#allocation6], 0
    %s29 = scalar_lea.sflag [#allocation6], 1
    %30 = vsyncpa %s29, 0
    loop: start=0, step=1, limit=10
    $region2: #{tpu_custom_call.1} parent=1 // loop_pre_header
      _
    $region3: #{tpu_custom_call.1} parent=1 // loop_header
      %s32 = sphi 0, %s36
      %p33 = scmp.ge.s32.totalorder %s32, 10
      %s39 = sphi 0, %s51
      %s40 = sphi 0, %s47
      %s41 = sphi 0, %s39
      %s42 = sphi 0, %s40
      %s43 = sphi 0, %s41
      %s44 = sphi 0, %s42
      %s54 = sphi 0, %s56
      %s57 = sphi 0, %s54
      %s58 = sphi 0, %s57
      %s74 = sphi 0, %s58
      %s80 = sphi 0, %s82
      %s83 = sphi 0, %s80
      %s84 = sphi 0, %s83
      %s100 = sphi 0, %s84
      %s106 = sphi 0, %s108
      %s109 = sphi 0, %s106
      %s110 = sphi 0, %s109
      %s126 = sphi 0, %s110
      %s132 = sphi 0, %s134
      %s135 = sphi 0, %s132
      %s136 = sphi 0, %s135
      %s152 = sphi 0, %s136
      %s158 = sphi 0, %s160
      %s161 = sphi 0, %s158
      %s162 = sphi 0, %s161
      %s178 = sphi 0, %s162
      %s184 = sphi 0, %s186
      %s187 = sphi 0, %s184
      %s188 = sphi 0, %s187
      %s204 = sphi 0, %s188
      %s210 = sphi 0, %s212
      %s213 = sphi 0, %s210
      %s214 = sphi 0, %s213
      %s230 = sphi 0, %s214
      %s236 = sphi 0, %s238
      %s239 = sphi 0, %s236
      %s240 = sphi 0, %s239
      %s256 = sphi 0, %s240
      %s262 = sphi 0, %s264
      %s265 = sphi 0, %s262
      %s266 = sphi 0, %s265
      %s282 = sphi 0, %s266
      %s286 = sphi 0, %s286
      %s288 = sphi 0, %s286
      %s289 = sphi 0, %s288
      %s303 = sphi 0, %s289
      %s307 = sphi 0, %s307
      %s309 = sphi 0, %s307
      %s310 = sphi 0, %s309
      %s324 = sphi 0, %s310
      %s328 = sphi 0, %s328
      %s330 = sphi 0, %s328
      %s331 = sphi 0, %s330
      %s345 = sphi 0, %s331
      %s349 = sphi 0, %s349
      %s351 = sphi 0, %s349
      %s352 = sphi 0, %s351
      %s366 = sphi 0, %s352
      %s370 = sphi 0, %s370
      %s372 = sphi 0, %s370
      %s373 = sphi 0, %s372
      %s387 = sphi 0, %s373
      %s391 = sphi 0, %s391
      %s393 = sphi 0, %s391
      %s394 = sphi 0, %s393
      %s408 = sphi 0, %s394
      %s412 = sphi 0, %s412
      %s414 = sphi 0, %s412
      %s415 = sphi 0, %s414
      %s429 = sphi 0, %s415
      %s433 = sphi 0, %s433
      %s435 = sphi 0, %s433
      %s436 = sphi 0, %s435
      %s450 = sphi 0, %s436
      %s454 = sphi 0, %s454
      %s456 = sphi 0, %s454
      %s457 = sphi 0, %s456
      %s471 = sphi 0, %s457
      %s477 = sphi 0, %s479
      %s480 = sphi 0, %s477
      %s481 = sphi 0, %s480
      %s497 = sphi 0, %s481
      %s505 = sphi 0, %s507
      %s508 = sphi 0, %s505
      %s509 = sphi 0, %s508
      %s525 = sphi 0, %s509
    $region4: #{tpu_custom_call.1} parent=1 // loop_header_branch
      %35 = sbr.rel (%p33) target = $region8
    $region5: #{tpu_custom_call.1} parent=1 // loop_body
      %s37 = ssub.s32 %s32, 1
      %s38 = ssub.s32 %s32, 2
      %s45 = sadd.s32 1, %s40
      %p46 = scmp.ge.s32.totalorder %s45, 4
      %s47 = scalar_select %p46, 0, %s45
      %s48 = sadd.s32 1, %s39
      %s49 = scalar_select %p46, %s48, %s39
      %p50 = scmp.ge.s32.totalorder %s49, 2
      %s51 = scalar_select %p50, 0, %s49
      %s52 = ssub.s32 %s39, %s51
      %p53 = scmp.eq.s32.totalorder %s52, 0
      %s55 = sadd.s32 %s54, 1
      %s56 = scalar_select %p53, %s54, %s55
      %p59 = pneg %p53
      %p60 = scmp.eq.s32.totalorder %s32, 7
      %p61 = por %p59, %p60
      %p62 = scmp.ne.s32.totalorder %s54, %s57
      %p63 = scmp.eq.s32.totalorder %s32, 0
      %p64 = por %p62, %p63
      %p65 = scmp.ne.s32.totalorder %s54, %s57
      %p66 = scmp.eq.s32.totalorder %s37, 7
      %p67 = por %p65, %p66
      %p68 = scmp.ne.s32.totalorder %s57, %s58
      %p69 = scmp.eq.s32.totalorder %s37, 0
      %p70 = por %p68, %p69
      %p71 = scmp.ne.s32.totalorder %s57, %s58
      %p72 = scmp.eq.s32.totalorder %s38, 7
      %p73 = por %p71, %p72
      %p75 = scmp.ne.s32.totalorder %s58, %s74
      %p76 = scmp.eq.s32.totalorder %s38, 0
      %p77 = por %p75, %p76
      %s78 = ssub.s32 %s39, %s51
      %p79 = scmp.eq.s32.totalorder %s78, 0
      %s81 = sadd.s32 %s80, 1
      %s82 = scalar_select %p79, %s80, %s81
      %p85 = pneg %p79
      %p86 = scmp.eq.s32.totalorder %s32, 7
      %p87 = por %p85, %p86
      %p88 = scmp.ne.s32.totalorder %s80, %s83
      %p89 = scmp.eq.s32.totalorder %s32, 0
      %p90 = por %p88, %p89
      %p91 = scmp.ne.s32.totalorder %s80, %s83
      %p92 = scmp.eq.s32.totalorder %s37, 7
      %p93 = por %p91, %p92
      %p94 = scmp.ne.s32.totalorder %s83, %s84
      %p95 = scmp.eq.s32.totalorder %s37, 0
      %p96 = por %p94, %p95
      %p97 = scmp.ne.s32.totalorder %s83, %s84
      %p98 = scmp.eq.s32.totalorder %s38, 7
      %p99 = por %p97, %p98
      %p101 = scmp.ne.s32.totalorder %s84, %s100
      %p102 = scmp.eq.s32.totalorder %s38, 0
      %p103 = por %p101, %p102
      %s104 = ssub.s32 %s40, %s47
      %p105 = scmp.eq.s32.totalorder %s104, 0
      %s107 = sadd.s32 %s106, 1
      %s108 = scalar_select %p105, %s106, %s107
      %p111 = pneg %p105
      %p112 = scmp.eq.s32.totalorder %s32, 7
      %p113 = por %p111, %p112
      %p114 = scmp.ne.s32.totalorder %s106, %s109
      %p115 = scmp.eq.s32.totalorder %s32, 0
      %p116 = por %p114, %p115
      %p117 = scmp.ne.s32.totalorder %s106, %s109
      %p118 = scmp.eq.s32.totalorder %s37, 7
      %p119 = por %p117, %p118
      %p120 = scmp.ne.s32.totalorder %s109, %s110
      %p121 = scmp.eq.s32.totalorder %s37, 0
      %p122 = por %p120, %p121
      %p123 = scmp.ne.s32.totalorder %s109, %s110
      %p124 = scmp.eq.s32.totalorder %s38, 7
      %p125 = por %p123, %p124
      %p127 = scmp.ne.s32.totalorder %s110, %s126
      %p128 = scmp.eq.s32.totalorder %s38, 0
      %p129 = por %p127, %p128
      %s130 = ssub.s32 %s40, %s47
      %p131 = scmp.eq.s32.totalorder %s130, 0
      %s133 = sadd.s32 %s132, 1
      %s134 = scalar_select %p131, %s132, %s133
      %p137 = pneg %p131
      %p138 = scmp.eq.s32.totalorder %s32, 7
      %p139 = por %p137, %p138
      %p140 = scmp.ne.s32.totalorder %s132, %s135
      %p141 = scmp.eq.s32.totalorder %s32, 0
      %p142 = por %p140, %p141
      %p143 = scmp.ne.s32.totalorder %s132, %s135
      %p144 = scmp.eq.s32.totalorder %s37, 7
      %p145 = por %p143, %p144
      %p146 = scmp.ne.s32.totalorder %s135, %s136
      %p147 = scmp.eq.s32.totalorder %s37, 0
      %p148 = por %p146, %p147
      %p149 = scmp.ne.s32.totalorder %s135, %s136
      %p150 = scmp.eq.s32.totalorder %s38, 7
      %p151 = por %p149, %p150
      %p153 = scmp.ne.s32.totalorder %s136, %s152
      %p154 = scmp.eq.s32.totalorder %s38, 0
      %p155 = por %p153, %p154
      %s156 = ssub.s32 %s40, %s47
      %p157 = scmp.eq.s32.totalorder %s156, 0
      %s159 = sadd.s32 %s158, 1
      %s160 = scalar_select %p157, %s158, %s159
      %p163 = pneg %p157
      %p164 = scmp.eq.s32.totalorder %s32, 7
      %p165 = por %p163, %p164
      %p166 = scmp.ne.s32.totalorder %s158, %s161
      %p167 = scmp.eq.s32.totalorder %s32, 0
      %p168 = por %p166, %p167
      %p169 = scmp.ne.s32.totalorder %s158, %s161
      %p170 = scmp.eq.s32.totalorder %s37, 7
      %p171 = por %p169, %p170
      %p172 = scmp.ne.s32.totalorder %s161, %s162
      %p173 = scmp.eq.s32.totalorder %s37, 0
      %p174 = por %p172, %p173
      %p175 = scmp.ne.s32.totalorder %s161, %s162
      %p176 = scmp.eq.s32.totalorder %s38, 7
      %p177 = por %p175, %p176
      %p179 = scmp.ne.s32.totalorder %s162, %s178
      %p180 = scmp.eq.s32.totalorder %s38, 0
      %p181 = por %p179, %p180
      %s182 = ssub.s32 %s40, %s47
      %p183 = scmp.eq.s32.totalorder %s182, 0
      %s185 = sadd.s32 %s184, 1
      %s186 = scalar_select %p183, %s184, %s185
      %p189 = pneg %p183
      %p190 = scmp.eq.s32.totalorder %s32, 7
      %p191 = por %p189, %p190
      %p192 = scmp.ne.s32.totalorder %s184, %s187
      %p193 = scmp.eq.s32.totalorder %s32, 0
      %p194 = por %p192, %p193
      %p195 = scmp.ne.s32.totalorder %s184, %s187
      %p196 = scmp.eq.s32.totalorder %s37, 7
      %p197 = por %p195, %p196
      %p198 = scmp.ne.s32.totalorder %s187, %s188
      %p199 = scmp.eq.s32.totalorder %s37, 0
      %p200 = por %p198, %p199
      %p201 = scmp.ne.s32.totalorder %s187, %s188
      %p202 = scmp.eq.s32.totalorder %s38, 7
      %p203 = por %p201, %p202
      %p205 = scmp.ne.s32.totalorder %s188, %s204
      %p206 = scmp.eq.s32.totalorder %s38, 0
      %p207 = por %p205, %p206
      %s208 = ssub.s32 %s40, %s47
      %p209 = scmp.eq.s32.totalorder %s208, 0
      %s211 = sadd.s32 %s210, 1
      %s212 = scalar_select %p209, %s210, %s211
      %p215 = pneg %p209
      %p216 = scmp.eq.s32.totalorder %s32, 7
      %p217 = por %p215, %p216
      %p218 = scmp.ne.s32.totalorder %s210, %s213
      %p219 = scmp.eq.s32.totalorder %s32, 0
      %p220 = por %p218, %p219
      %p221 = scmp.ne.s32.totalorder %s210, %s213
      %p222 = scmp.eq.s32.totalorder %s37, 7
      %p223 = por %p221, %p222
      %p224 = scmp.ne.s32.totalorder %s213, %s214
      %p225 = scmp.eq.s32.totalorder %s37, 0
      %p226 = por %p224, %p225
      %p227 = scmp.ne.s32.totalorder %s213, %s214
      %p228 = scmp.eq.s32.totalorder %s38, 7
      %p229 = por %p227, %p228
      %p231 = scmp.ne.s32.totalorder %s214, %s230
      %p232 = scmp.eq.s32.totalorder %s38, 0
      %p233 = por %p231, %p232
      %s234 = ssub.s32 %s40, %s47
      %p235 = scmp.eq.s32.totalorder %s234, 0
      %s237 = sadd.s32 %s236, 1
      %s238 = scalar_select %p235, %s236, %s237
      %p241 = pneg %p235
      %p242 = scmp.eq.s32.totalorder %s32, 7
      %p243 = por %p241, %p242
      %p244 = scmp.ne.s32.totalorder %s236, %s239
      %p245 = scmp.eq.s32.totalorder %s32, 0
      %p246 = por %p244, %p245
      %p247 = scmp.ne.s32.totalorder %s236, %s239
      %p248 = scmp.eq.s32.totalorder %s37, 7
      %p249 = por %p247, %p248
      %p250 = scmp.ne.s32.totalorder %s239, %s240
      %p251 = scmp.eq.s32.totalorder %s37, 0
      %p252 = por %p250, %p251
      %p253 = scmp.ne.s32.totalorder %s239, %s240
      %p254 = scmp.eq.s32.totalorder %s38, 7
      %p255 = por %p253, %p254
      %p257 = scmp.ne.s32.totalorder %s240, %s256
      %p258 = scmp.eq.s32.totalorder %s38, 0
      %p259 = por %p257, %p258
      %s260 = ssub.s32 %s40, %s47
      %p261 = scmp.eq.s32.totalorder %s260, 0
      %s263 = sadd.s32 %s262, 1
      %s264 = scalar_select %p261, %s262, %s263
      %p267 = pneg %p261
      %p268 = scmp.eq.s32.totalorder %s32, 7
      %p269 = por %p267, %p268
      %p270 = scmp.ne.s32.totalorder %s262, %s265
      %p271 = scmp.eq.s32.totalorder %s32, 0
      %p272 = por %p270, %p271
      %p273 = scmp.ne.s32.totalorder %s262, %s265
      %p274 = scmp.eq.s32.totalorder %s37, 7
      %p275 = por %p273, %p274
      %p276 = scmp.ne.s32.totalorder %s265, %s266
      %p277 = scmp.eq.s32.totalorder %s37, 0
      %p278 = por %p276, %p277
      %p279 = scmp.ne.s32.totalorder %s265, %s266
      %p280 = scmp.eq.s32.totalorder %s38, 7
      %p281 = por %p279, %p280
      %p283 = scmp.ne.s32.totalorder %s266, %s282
      %p284 = scmp.eq.s32.totalorder %s38, 0
      %p285 = por %p283, %p284
      %s287 = sadd.s32 %s286, 1
      %p290 = scmp.eq.s32.totalorder %s32, 7
      %p291 = scmp.ne.s32.totalorder %s286, %s288
      %p292 = scmp.eq.s32.totalorder %s32, 0
      %p293 = por %p291, %p292
      %p294 = scmp.ne.s32.totalorder %s286, %s288
      %p295 = scmp.eq.s32.totalorder %s37, 7
      %p296 = por %p294, %p295
      %p297 = scmp.ne.s32.totalorder %s288, %s289
      %p298 = scmp.eq.s32.totalorder %s37, 0
      %p299 = por %p297, %p298
      %p300 = scmp.ne.s32.totalorder %s288, %s289
      %p301 = scmp.eq.s32.totalorder %s38, 7
      %p302 = por %p300, %p301
      %p304 = scmp.ne.s32.totalorder %s289, %s303
      %p305 = scmp.eq.s32.totalorder %s38, 0
      %p306 = por %p304, %p305
      %s308 = sadd.s32 %s307, 1
      %p311 = scmp.eq.s32.totalorder %s32, 7
      %p312 = scmp.ne.s32.totalorder %s307, %s309
      %p313 = scmp.eq.s32.totalorder %s32, 0
      %p314 = por %p312, %p313
      %p315 = scmp.ne.s32.totalorder %s307, %s309
      %p316 = scmp.eq.s32.totalorder %s37, 7
      %p317 = por %p315, %p316
      %p318 = scmp.ne.s32.totalorder %s309, %s310
      %p319 = scmp.eq.s32.totalorder %s37, 0
      %p320 = por %p318, %p319
      %p321 = scmp.ne.s32.totalorder %s309, %s310
      %p322 = scmp.eq.s32.totalorder %s38, 7
      %p323 = por %p321, %p322
      %p325 = scmp.ne.s32.totalorder %s310, %s324
      %p326 = scmp.eq.s32.totalorder %s38, 0
      %p327 = por %p325, %p326
      %s329 = sadd.s32 %s328, 1
      %p332 = scmp.eq.s32.totalorder %s32, 7
      %p333 = scmp.ne.s32.totalorder %s328, %s330
      %p334 = scmp.eq.s32.totalorder %s32, 0
      %p335 = por %p333, %p334
      %p336 = scmp.ne.s32.totalorder %s328, %s330
      %p337 = scmp.eq.s32.totalorder %s37, 7
      %p338 = por %p336, %p337
      %p339 = scmp.ne.s32.totalorder %s330, %s331
      %p340 = scmp.eq.s32.totalorder %s37, 0
      %p341 = por %p339, %p340
      %p342 = scmp.ne.s32.totalorder %s330, %s331
      %p343 = scmp.eq.s32.totalorder %s38, 7
      %p344 = por %p342, %p343
      %p346 = scmp.ne.s32.totalorder %s331, %s345
      %p347 = scmp.eq.s32.totalorder %s38, 0
      %p348 = por %p346, %p347
      %s350 = sadd.s32 %s349, 1
      %p353 = scmp.eq.s32.totalorder %s32, 7
      %p354 = scmp.ne.s32.totalorder %s349, %s351
      %p355 = scmp.eq.s32.totalorder %s32, 0
      %p356 = por %p354, %p355
      %p357 = scmp.ne.s32.totalorder %s349, %s351
      %p358 = scmp.eq.s32.totalorder %s37, 7
      %p359 = por %p357, %p358
      %p360 = scmp.ne.s32.totalorder %s351, %s352
      %p361 = scmp.eq.s32.totalorder %s37, 0
      %p362 = por %p360, %p361
      %p363 = scmp.ne.s32.totalorder %s351, %s352
      %p364 = scmp.eq.s32.totalorder %s38, 7
      %p365 = por %p363, %p364
      %p367 = scmp.ne.s32.totalorder %s352, %s366
      %p368 = scmp.eq.s32.totalorder %s38, 0
      %p369 = por %p367, %p368
      %s371 = sadd.s32 %s370, 1
      %p374 = scmp.eq.s32.totalorder %s32, 7
      %p375 = scmp.ne.s32.totalorder %s370, %s372
      %p376 = scmp.eq.s32.totalorder %s32, 0
      %p377 = por %p375, %p376
      %p378 = scmp.ne.s32.totalorder %s370, %s372
      %p379 = scmp.eq.s32.totalorder %s37, 7
      %p380 = por %p378, %p379
      %p381 = scmp.ne.s32.totalorder %s372, %s373
      %p382 = scmp.eq.s32.totalorder %s37, 0
      %p383 = por %p381, %p382
      %p384 = scmp.ne.s32.totalorder %s372, %s373
      %p385 = scmp.eq.s32.totalorder %s38, 7
      %p386 = por %p384, %p385
      %p388 = scmp.ne.s32.totalorder %s373, %s387
      %p389 = scmp.eq.s32.totalorder %s38, 0
      %p390 = por %p388, %p389
      %s392 = sadd.s32 %s391, 1
      %p395 = scmp.eq.s32.totalorder %s32, 7
      %p396 = scmp.ne.s32.totalorder %s391, %s393
      %p397 = scmp.eq.s32.totalorder %s32, 0
      %p398 = por %p396, %p397
      %p399 = scmp.ne.s32.totalorder %s391, %s393
      %p400 = scmp.eq.s32.totalorder %s37, 7
      %p401 = por %p399, %p400
      %p402 = scmp.ne.s32.totalorder %s393, %s394
      %p403 = scmp.eq.s32.totalorder %s37, 0
      %p404 = por %p402, %p403
      %p405 = scmp.ne.s32.totalorder %s393, %s394
      %p406 = scmp.eq.s32.totalorder %s38, 7
      %p407 = por %p405, %p406
      %p409 = scmp.ne.s32.totalorder %s394, %s408
      %p410 = scmp.eq.s32.totalorder %s38, 0
      %p411 = por %p409, %p410
      %s413 = sadd.s32 %s412, 1
      %p416 = scmp.eq.s32.totalorder %s32, 7
      %p417 = scmp.ne.s32.totalorder %s412, %s414
      %p418 = scmp.eq.s32.totalorder %s32, 0
      %p419 = por %p417, %p418
      %p420 = scmp.ne.s32.totalorder %s412, %s414
      %p421 = scmp.eq.s32.totalorder %s37, 7
      %p422 = por %p420, %p421
      %p423 = scmp.ne.s32.totalorder %s414, %s415
      %p424 = scmp.eq.s32.totalorder %s37, 0
      %p425 = por %p423, %p424
      %p426 = scmp.ne.s32.totalorder %s414, %s415
      %p427 = scmp.eq.s32.totalorder %s38, 7
      %p428 = por %p426, %p427
      %p430 = scmp.ne.s32.totalorder %s415, %s429
      %p431 = scmp.eq.s32.totalorder %s38, 0
      %p432 = por %p430, %p431
      %s434 = sadd.s32 %s433, 1
      %p437 = scmp.eq.s32.totalorder %s32, 7
      %p438 = scmp.ne.s32.totalorder %s433, %s435
      %p439 = scmp.eq.s32.totalorder %s32, 0
      %p440 = por %p438, %p439
      %p441 = scmp.ne.s32.totalorder %s433, %s435
      %p442 = scmp.eq.s32.totalorder %s37, 7
      %p443 = por %p441, %p442
      %p444 = scmp.ne.s32.totalorder %s435, %s436
      %p445 = scmp.eq.s32.totalorder %s37, 0
      %p446 = por %p444, %p445
      %p447 = scmp.ne.s32.totalorder %s435, %s436
      %p448 = scmp.eq.s32.totalorder %s38, 7
      %p449 = por %p447, %p448
      %p451 = scmp.ne.s32.totalorder %s436, %s450
      %p452 = scmp.eq.s32.totalorder %s38, 0
      %p453 = por %p451, %p452
      %s455 = sadd.s32 %s454, 1
      %p458 = scmp.eq.s32.totalorder %s32, 7
      %p459 = scmp.ne.s32.totalorder %s454, %s456
      %p460 = scmp.eq.s32.totalorder %s32, 0
      %p461 = por %p459, %p460
      %p462 = scmp.ne.s32.totalorder %s454, %s456
      %p463 = scmp.eq.s32.totalorder %s37, 7
      %p464 = por %p462, %p463
      %p465 = scmp.ne.s32.totalorder %s456, %s457
      %p466 = scmp.eq.s32.totalorder %s37, 0
      %p467 = por %p465, %p466
      %p468 = scmp.ne.s32.totalorder %s456, %s457
      %p469 = scmp.eq.s32.totalorder %s38, 7
      %p470 = por %p468, %p469
      %p472 = scmp.ne.s32.totalorder %s457, %s471
      %p473 = scmp.eq.s32.totalorder %s38, 0
      %p474 = por %p472, %p473
      %s475 = ssub.s32 %s39, %s51
      %p476 = scmp.eq.s32.totalorder %s475, 0
      %s478 = sadd.s32 %s477, 1
      %s479 = scalar_select %p476, %s477, %s478
      %p482 = pneg %p476
      %p483 = scmp.eq.s32.totalorder %s32, 7
      %p484 = por %p482, %p483
      %p485 = scmp.ne.s32.totalorder %s477, %s480
      %p486 = scmp.eq.s32.totalorder %s32, 0
      %p487 = por %p485, %p486
      %p488 = scmp.ne.s32.totalorder %s477, %s480
      %p489 = scmp.eq.s32.totalorder %s37, 7
      %p490 = por %p488, %p489
      %p491 = scmp.ne.s32.totalorder %s480, %s481
      %p492 = scmp.eq.s32.totalorder %s37, 0
      %p493 = por %p491, %p492
      %p494 = scmp.ne.s32.totalorder %s480, %s481
      %p495 = scmp.eq.s32.totalorder %s38, 7
      %p496 = por %p494, %p495
      %p498 = scmp.ne.s32.totalorder %s481, %s497
      %p499 = scmp.eq.s32.totalorder %s38, 0
      %p500 = por %p498, %p499
      %s501 = ssub.s32 %s40, %s47
      %s502 = ssub.s32 %s39, %s51
      %s503 = sor.u32 %s501, %s502
      %p504 = scmp.eq.s32.totalorder %s503, 0
      %s506 = sadd.s32 %s505, 1
      %s507 = scalar_select %p504, %s505, %s506
      %p510 = pneg %p504
      %p511 = scmp.eq.s32.totalorder %s32, 7
      %p512 = por %p510, %p511
      %p513 = scmp.ne.s32.totalorder %s505, %s508
      %p514 = scmp.eq.s32.totalorder %s32, 0
      %p515 = por %p513, %p514
      %p516 = scmp.ne.s32.totalorder %s505, %s508
      %p517 = scmp.eq.s32.totalorder %s37, 7
      %p518 = por %p516, %p517
      %p519 = scmp.ne.s32.totalorder %s508, %s509
      %p520 = scmp.eq.s32.totalorder %s37, 0
      %p521 = por %p519, %p520
      %p522 = scmp.ne.s32.totalorder %s508, %s509
      %p523 = scmp.eq.s32.totalorder %s38, 7
      %p524 = por %p522, %p523
      %p526 = scmp.ne.s32.totalorder %s509, %s525
      %p527 = scmp.eq.s32.totalorder %s38, 0
      %p528 = por %p526, %p527
      %p529 = scmp.le.s32.totalorder 1, %s32
      %p530 = scmp.lt.s32.totalorder %s32, 9
      %p531 = pnand %p529, %p530
      %p532 = pneg %p531
      // Predicated region
      $region9: #{tpu_custom_call.1} parent=5 // pred_check
        _
      $region10: #{tpu_custom_call.1} parent=5 // pred_check_branch
        %534 = sbr.rel (%p531) target = $region12
      $region11: #{tpu_custom_call.1} parent=5 // pred_region
        %s535 = ssub.s32 %s32, 1
        // Predicated region
        $region13: #{tpu_custom_call.1} parent=11 // pred_check
          %p536 = pneg %p299
        $region14: #{tpu_custom_call.1} parent=11 // pred_check_branch
          %538 = sbr.rel (%p536) target = $region16
        $region15: #{tpu_custom_call.1} parent=11 // pred_region
          _
        $region16: #{tpu_custom_call.1} parent=11 // pred_fallthru
          _
        // Predicated region
        $region17: #{tpu_custom_call.1} parent=11 // pred_check
          %p539 = pneg %p320
        $region18: #{tpu_custom_call.1} parent=11 // pred_check_branch
          %541 = sbr.rel (%p539) target = $region20
        $region19: #{tpu_custom_call.1} parent=11 // pred_region
          _
        $region20: #{tpu_custom_call.1} parent=11 // pred_fallthru
          _
        // Predicated region
        $region21: #{tpu_custom_call.1} parent=11 // pred_check
          %p542 = pneg %p341
        $region22: #{tpu_custom_call.1} parent=11 // pred_check_branch
          %544 = sbr.rel (%p542) target = $region24
        $region23: #{tpu_custom_call.1} parent=11 // pred_region
          _
        $region24: #{tpu_custom_call.1} parent=11 // pred_fallthru
          _
        // Predicated region
        $region25: #{tpu_custom_call.1} parent=11 // pred_check
          %p545 = pneg %p362
        $region26: #{tpu_custom_call.1} parent=11 // pred_check_branch
          %547 = sbr.rel (%p545) target = $region28
        $region27: #{tpu_custom_call.1} parent=11 // pred_region
          _
        $region28: #{tpu_custom_call.1} parent=11 // pred_fallthru
          _
        // Predicated region
        $region29: #{tpu_custom_call.1} parent=11 // pred_check
          %p548 = pneg %p383
        $region30: #{tpu_custom_call.1} parent=11 // pred_check_branch
          %550 = sbr.rel (%p548) target = $region32
        $region31: #{tpu_custom_call.1} parent=11 // pred_region
          _
        $region32: #{tpu_custom_call.1} parent=11 // pred_fallthru
          _
        // Predicated region
        $region33: #{tpu_custom_call.1} parent=11 // pred_check
          %p551 = pneg %p404
        $region34: #{tpu_custom_call.1} parent=11 // pred_check_branch
          %553 = sbr.rel (%p551) target = $region36
        $region35: #{tpu_custom_call.1} parent=11 // pred_region
          _
        $region36: #{tpu_custom_call.1} parent=11 // pred_fallthru
          _
        // Predicated region
        $region37: #{tpu_custom_call.1} parent=11 // pred_check
          %p554 = pneg %p425
        $region38: #{tpu_custom_call.1} parent=11 // pred_check_branch
          %556 = sbr.rel (%p554) target = $region40
        $region39: #{tpu_custom_call.1} parent=11 // pred_region
          _
        $region40: #{tpu_custom_call.1} parent=11 // pred_fallthru
          _
        // Predicated region
        $region41: #{tpu_custom_call.1} parent=11 // pred_check
          %p557 = pneg %p446
        $region42: #{tpu_custom_call.1} parent=11 // pred_check_branch
          %559 = sbr.rel (%p557) target = $region44
        $region43: #{tpu_custom_call.1} parent=11 // pred_region
          _
        $region44: #{tpu_custom_call.1} parent=11 // pred_fallthru
          _
        // Predicated region
        $region45: #{tpu_custom_call.1} parent=11 // pred_check
          %p560 = pneg %p467
        $region46: #{tpu_custom_call.1} parent=11 // pred_check_branch
          %562 = sbr.rel (%p560) target = $region48
        $region47: #{tpu_custom_call.1} parent=11 // pred_region
          _
        $region48: #{tpu_custom_call.1} parent=11 // pred_fallthru
          _
      $region12: #{tpu_custom_call.1} parent=5 // pred_fallthru
        _
      %p563 = scmp.lt.s32.totalorder %s32, 8
      // Predicated region
      $region49: #{tpu_custom_call.1} parent=5 // pred_check
        %p564 = pneg %p563
      $region50: #{tpu_custom_call.1} parent=5 // pred_check_branch
        %566 = sbr.rel (%p564) target = $region52
      $region51: #{tpu_custom_call.1} parent=5 // pred_region
        // Predicated region
        $region53: #{tpu_custom_call.1} parent=51 // pred_check
          %p567 = pneg %p64
        $region54: #{tpu_custom_call.1} parent=51 // pred_check_branch
          %569 = sbr.rel (%p567) target = $region56
        $region55: #{tpu_custom_call.1} parent=51 // pred_region
          %p570 = scmp.lt.s32.totalorder %s39, 1
          %s571 = scalar_select %p570, %s39, 1
          %s572 = smul.addr %s571, 4
          %s573 = scalar_lea.vmem %s0, %s572
        $region56: #{tpu_custom_call.1} parent=51 // pred_fallthru
          _
        // Predicated region
        $region57: #{tpu_custom_call.1} parent=51 // pred_check
          %p574 = pneg %p90
        $region58: #{tpu_custom_call.1} parent=51 // pred_check_branch
          %576 = sbr.rel (%p574) target = $region60
        $region59: #{tpu_custom_call.1} parent=51 // pred_region
          %p577 = scmp.lt.s32.totalorder %s39, 1
          %s578 = scalar_select %p577, %s39, 1
          %s579 = smul.addr %s578, 8
          %s580 = scalar_lea.vmem %s1, %s579
        $region60: #{tpu_custom_call.1} parent=51 // pred_fallthru
          _
        // Predicated region
        $region61: #{tpu_custom_call.1} parent=51 // pred_check
          %p581 = pneg %p116
        $region62: #{tpu_custom_call.1} parent=51 // pred_check_branch
          %583 = sbr.rel (%p581) target = $region64
        $region63: #{tpu_custom_call.1} parent=51 // pred_region
          %p584 = scmp.lt.s32.totalorder %s40, 3
          %s585 = scalar_select %p584, %s40, 3
          %s586 = smul.addr %s585, 4
          %s587 = smul.addr %s586, 4
          %s588 = scalar_lea.vmem %s2, %s587
        $region64: #{tpu_custom_call.1} parent=51 // pred_fallthru
          _
        // Predicated region
        $region65: #{tpu_custom_call.1} parent=51 // pred_check
          %p589 = pneg %p142
        $region66: #{tpu_custom_call.1} parent=51 // pred_check_branch
          %591 = sbr.rel (%p589) target = $region68
        $region67: #{tpu_custom_call.1} parent=51 // pred_region
          %p592 = scmp.lt.s32.totalorder %s40, 3
          %s593 = scalar_select %p592, %s40, 3
          %s594 = scalar_lea.vmem %s3, %s593
        $region68: #{tpu_custom_call.1} parent=51 // pred_fallthru
          _
        // Predicated region
        $region69: #{tpu_custom_call.1} parent=51 // pred_check
          %p595 = pneg %p168
        $region70: #{tpu_custom_call.1} parent=51 // pred_check_branch
          %597 = sbr.rel (%p595) target = $region72
        $region71: #{tpu_custom_call.1} parent=51 // pred_region
          %p598 = scmp.lt.s32.totalorder %s40, 3
          %s599 = scalar_select %p598, %s40, 3
          %s600 = smul.addr %s599, 4
          %s601 = smul.addr %s600, 4
          %s602 = scalar_lea.vmem %s4, %s601
        $region72: #{tpu_custom_call.1} parent=51 // pred_fallthru
          _
        // Predicated region
        $region73: #{tpu_custom_call.1} parent=51 // pred_check
          %p603 = pneg %p194
        $region74: #{tpu_custom_call.1} parent=51 // pred_check_branch
          %605 = sbr.rel (%p603) target = $region76
        $region75: #{tpu_custom_call.1} parent=51 // pred_region
          %p606 = scmp.lt.s32.totalorder %s40, 3
          %s607 = scalar_select %p606, %s40, 3
          %s608 = scalar_lea.vmem %s5, %s607
        $region76: #{tpu_custom_call.1} parent=51 // pred_fallthru
          _
        // Predicated region
        $region77: #{tpu_custom_call.1} parent=51 // pred_check
          %p609 = pneg %p220
        $region78: #{tpu_custom_call.1} parent=51 // pred_check_branch
          %611 = sbr.rel (%p609) target = $region80
        $region79: #{tpu_custom_call.1} parent=51 // pred_region
          %p612 = scmp.lt.s32.totalorder %s40, 3
          %s613 = scalar_select %p612, %s40, 3
          %s614 = smul.addr %s613, 4
          %s615 = smul.addr %s614, 4
          %s616 = scalar_lea.vmem %s6, %s615
        $region80: #{tpu_custom_call.1} parent=51 // pred_fallthru
          _
        // Predicated region
        $region81: #{tpu_custom_call.1} parent=51 // pred_check
          %p617 = pneg %p246
        $region82: #{tpu_custom_call.1} parent=51 // pred_check_branch
          %619 = sbr.rel (%p617) target = $region84
        $region83: #{tpu_custom_call.1} parent=51 // pred_region
          %p620 = scmp.lt.s32.totalorder %s40, 3
          %s621 = scalar_select %p620, %s40, 3
          %s622 = scalar_lea.vmem %s7, %s621
        $region84: #{tpu_custom_call.1} parent=51 // pred_fallthru
          _
        // Predicated region
        $region85: #{tpu_custom_call.1} parent=51 // pred_check
          %p623 = pneg %p272
        $region86: #{tpu_custom_call.1} parent=51 // pred_check_branch
          %625 = sbr.rel (%p623) target = $region88
        $region87: #{tpu_custom_call.1} parent=51 // pred_region
          %p626 = scmp.lt.s32.totalorder %s40, 3
          %s627 = scalar_select %p626, %s40, 3
          %s628 = smul.addr %s627, 4
          %s629 = scalar_lea.vmem %s8, %s628
        $region88: #{tpu_custom_call.1} parent=51 // pred_fallthru
          _
      $region52: #{tpu_custom_call.1} parent=5 // pred_fallthru
        _
      %p630 = scmp.le.s32.totalorder 1, %s32
      %p631 = scmp.lt.s32.totalorder %s32, 9
      %p632 = pnand %p630, %p631
      %p633 = pneg %p632
      // Predicated region
      $region89: #{tpu_custom_call.1} parent=5 // pred_check
        _
      $region90: #{tpu_custom_call.1} parent=5 // pred_check_branch
        %635 = sbr.rel (%p632) target = $region92
      $region91: #{tpu_custom_call.1} parent=5 // pred_region
        %s636 = ssub.s32 %s32, 1
        %p637 = scmp.lt.s32.totalorder %s41, 1
        %s638 = scalar_select %p637, %s41, 1
        %s639 = smul.addr %s638, 4
        %s640 = scalar_lea.vmem %s0, %s639
        %p641 = pneg %p70
        %p642 = pneg %p67
        %p643 = scmp.lt.s32.totalorder %s41, 1
        %s644 = scalar_select %p643, %s41, 1
        %s645 = smul.addr %s644, 8
        %s646 = scalar_lea.vmem %s1, %s645
        %p647 = pneg %p96
        %p648 = pneg %p93
        %p649 = scmp.lt.s32.totalorder %s42, 3
        %s650 = scalar_select %p649, %s42, 3
        %s651 = smul.addr %s650, 4
        %s652 = smul.addr %s651, 4
        %s653 = scalar_lea.vmem %s2, %s652
        %p654 = pneg %p122
        %p655 = pneg %p119
        %p656 = scmp.lt.s32.totalorder %s42, 3
        %s657 = scalar_select %p656, %s42, 3
        %s658 = scalar_lea.vmem %s3, %s657
        %p659 = pneg %p148
        %p660 = pneg %p145
        %p661 = scmp.lt.s32.totalorder %s42, 3
        %s662 = scalar_select %p661, %s42, 3
        %s663 = smul.addr %s662, 4
        %s664 = smul.addr %s663, 4
        %s665 = scalar_lea.vmem %s4, %s664
        %p666 = pneg %p174
        %p667 = pneg %p171
        %p668 = scmp.lt.s32.totalorder %s42, 3
        %s669 = scalar_select %p668, %s42, 3
        %s670 = scalar_lea.vmem %s5, %s669
        %p671 = pneg %p200
        %p672 = pneg %p197
        %p673 = scmp.lt.s32.totalorder %s42, 3
        %s674 = scalar_select %p673, %s42, 3
        %s675 = smul.addr %s674, 4
        %s676 = smul.addr %s675, 4
        %s677 = scalar_lea.vmem %s6, %s676
        %p678 = pneg %p226
        %p679 = pneg %p223
        %p680 = scmp.lt.s32.totalorder %s42, 3
        %s681 = scalar_select %p680, %s42, 3
        %s682 = scalar_lea.vmem %s7, %s681
        %p683 = pneg %p252
        %p684 = pneg %p249
        %p685 = scmp.lt.s32.totalorder %s42, 3
        %s686 = scalar_select %p685, %s42, 3
        %s687 = smul.addr %s686, 4
        %s688 = scalar_lea.vmem %s8, %s687
        %p689 = pneg %p278
        %p690 = pneg %p275
        %p691 = pneg %p299
        %p692 = pneg %p296
        %p693 = pneg %p320
        %p694 = pneg %p317
        %p695 = pneg %p341
        %p696 = pneg %p338
        %p697 = pneg %p362
        %p698 = pneg %p359
        %p699 = pneg %p383
        %p700 = pneg %p380
        %p701 = pneg %p404
        %p702 = pneg %p401
        %p703 = pneg %p425
        %p704 = pneg %p422
        %p705 = pneg %p446
        %p706 = pneg %p443
        %p707 = pneg %p467
        %p708 = pneg %p464
        %p709 = pneg %p493
        %p710 = pneg %p490
        %s711 = sand.u32 %s480, 1
        %s712 = scalar_lea.sflag [#allocation4], %s711
        %s713 = sand.u32 %s480, 1
        %s714 = smul.addr %s713, 8
        %s715 = scalar_lea.vmem [#allocation3], %s714
        %p716 = pneg %p521
        %p717 = pneg %p518
        %s718 = sand.u32 %s508, 1
        %s719 = scalar_lea.sflag [#allocation6], %s718
        %s720 = sand.u32 %s508, 1
        %s721 = smul.addr %s720, 8
        %s722 = scalar_lea.vmem [#allocation5], %s721
        %p723 = scmp.lt.s32.totalorder %s41, 1
        %s724 = scalar_select %p723, %s41, 1
        %s725 = smul.addr %s724, 4
        %s726 = scalar_lea.vmem %s0, %s725
        %p727 = scmp.lt.s32.totalorder %s41, 1
        %s728 = scalar_select %p727, %s41, 1
        %s729 = smul.addr %s728, 8
        %s730 = scalar_lea.vmem %s1, %s729
        %p731 = scmp.lt.s32.totalorder %s42, 3
        %s732 = scalar_select %p731, %s42, 3
        %s733 = smul.addr %s732, 4
        %s734 = smul.addr %s733, 4
        %s735 = scalar_lea.vmem %s2, %s734
        %p736 = scmp.lt.s32.totalorder %s42, 3
        %s737 = scalar_select %p736, %s42, 3
        %s738 = scalar_lea.vmem %s3, %s737
        %p739 = scmp.lt.s32.totalorder %s42, 3
        %s740 = scalar_select %p739, %s42, 3
        %s741 = smul.addr %s740, 4
        %s742 = smul.addr %s741, 4
        %s743 = scalar_lea.vmem %s4, %s742
        %p744 = scmp.lt.s32.totalorder %s42, 3
        %s745 = scalar_select %p744, %s42, 3
        %s746 = scalar_lea.vmem %s5, %s745
        %p747 = scmp.lt.s32.totalorder %s42, 3
        %s748 = scalar_select %p747, %s42, 3
        %s749 = smul.addr %s748, 4
        %s750 = smul.addr %s749, 4
        %s751 = scalar_lea.vmem %s6, %s750
        %p752 = scmp.lt.s32.totalorder %s42, 3
        %s753 = scalar_select %p752, %s42, 3
        %s754 = scalar_lea.vmem %s7, %s753
        %p755 = scmp.lt.s32.totalorder %s42, 3
        %s756 = scalar_select %p755, %s42, 3
        %s757 = smul.addr %s756, 4
        %s758 = scalar_lea.vmem %s8, %s757
        %v760 = vld [vmem:[%s726] sm:$0xf]
        %p761 = scmp.eq.s32.totalorder %s42, 0
        // Predicated region
        $region93: #{tpu_custom_call.1} parent=91 // pred_check
          %p762 = pneg %p761
        $region94: #{tpu_custom_call.1} parent=91 // pred_check_branch
          %764 = sbr.rel (%p762) target = $region96
        $region95: #{tpu_custom_call.1} parent=91 // pred_region
          %vm765 = vcmask 261120
          %766 = vst.msk [vmem:[#allocation2] sm:$0xff] %vm765, 0.0
        $region96: #{tpu_custom_call.1} parent=91 // pred_fallthru
          _
        %v767 = vld [vmem:[%s735] sm:$0xf]
        %v768 = vld [vmem:[%s735 + $0x4] sm:$0xf]
        %v769 = vld [vmem:[%s735 + $0x8] sm:$0xf]
        %v770 = vld [vmem:[%s735 + $0xc] sm:$0xf]
        %v771 = vld [vmem:[%s738] sm:$0x1]
        %v773 = vperm.slane %v771, 0
        %v779 = vunpack.c.l.b16 %v767
        %v780 = vunpack.c.l.b16 %v768
        %v781 = vunpack.c.l.b16 %v769
        %v782 = vunpack.c.l.b16 %v770
        %v783 = vpack.c.b16 %v780, %v779
        %v784 = vpack.c.b16 %v782, %v781
        %vm787 = vcmask 261120
        %v789 = vsel %vm787, %v760, 0
        %791 = vmatpush.bf16.msra.mxu0 0
        %792 = vmatpush.bf16.msra.mxu0 0
        %793 = vmatpush.bf16.msra.mxu0 0
        %794 = vmatpush.bf16.msra.mxu0 0
        %795 = vmatpush.bf16.msra.mxu0 0
        %796 = vmatpush.bf16.msra.mxu0 0
        %797 = vmatpush.bf16.msra.mxu0 %v784
        %798 = vmatpush.bf16.msra.mxu0 %v783
        %799 = vmatmul.bf16.gmra.mxu0 %v789
        %v800 = vpop.f32.mrf.mxu0
        %v801 = vadd.f32 %v773, %v800
        %v802 = vpop.f32.mrf.mxu0
        %803 = vdwg.mxu0
        %v804 = vpack.c.bf16 %v801, %v801
        %v805 = vld [vmem:[%s743] sm:$0xf]
        %v806 = vld [vmem:[%s743 + $0x4] sm:$0xf]
        %v807 = vld [vmem:[%s743 + $0x8] sm:$0xf]
        %v808 = vld [vmem:[%s743 + $0xc] sm:$0xf]
        %v809 = vld [vmem:[%s746] sm:$0x1]
        %v811 = vperm.slane %v809, 0
        %v817 = vunpack.c.l.b16 %v805
        %v818 = vunpack.c.l.b16 %v806
        %v819 = vunpack.c.l.b16 %v807
        %v820 = vunpack.c.l.b16 %v808
        %v821 = vpack.c.b16 %v818, %v817
        %v822 = vpack.c.b16 %v820, %v819
        %825 = vmatpush.bf16.msra.mxu0 0
        %826 = vmatpush.bf16.msra.mxu0 0
        %827 = vmatpush.bf16.msra.mxu0 0
        %828 = vmatpush.bf16.msra.mxu0 0
        %829 = vmatpush.bf16.msra.mxu0 0
        %830 = vmatpush.bf16.msra.mxu0 0
        %831 = vmatpush.bf16.msra.mxu0 %v822
        %832 = vmatpush.bf16.msra.mxu0 %v821
        %833 = vmatmul.bf16.gmra.mxu0 %v789
        %v834 = vpop.f32.mrf.mxu0
        %v835 = vadd.f32 %v811, %v834
        %v836 = vpop.f32.mrf.mxu0
        %837 = vdwg.mxu0
        %v838 = vpack.c.bf16 %v835, %v835
        %v839 = vld [vmem:[%s751] sm:$0xf]
        %v840 = vld [vmem:[%s751 + $0x4] sm:$0xf]
        %v841 = vld [vmem:[%s751 + $0x8] sm:$0xf]
        %v842 = vld [vmem:[%s751 + $0xc] sm:$0xf]
        %v843 = vld [vmem:[%s754] sm:$0x1]
        %v845 = vperm.slane %v843, 0
        %v851 = vunpack.c.l.b16 %v839
        %v852 = vunpack.c.l.b16 %v840
        %v853 = vunpack.c.l.b16 %v841
        %v854 = vunpack.c.l.b16 %v842
        %v855 = vpack.c.b16 %v852, %v851
        %v856 = vpack.c.b16 %v854, %v853
        %859 = vmatpush.bf16.msra.mxu0 0
        %860 = vmatpush.bf16.msra.mxu0 0
        %861 = vmatpush.bf16.msra.mxu0 0
        %862 = vmatpush.bf16.msra.mxu0 0
        %863 = vmatpush.bf16.msra.mxu0 0
        %864 = vmatpush.bf16.msra.mxu0 0
        %865 = vmatpush.bf16.msra.mxu0 %v856
        %866 = vmatpush.bf16.msra.mxu0 %v855
        %867 = vmatmul.bf16.gmra.mxu0 %v789
        %v868 = vpop.f32.mrf.mxu0
        %v869 = vadd.f32 %v845, %v868
        %v870 = vpop.f32.mrf.mxu0
        %871 = vdwg.mxu0
        %v872 = vpack.c.bf16 %v869, %v869
        %vm873 = vcmask 64512
        %v875 = vsel %vm873, %v804, 0
        %v878 = vsel %vm873, %v838, 0
        %880 = vmatpush.bf16.xpose.msra.mxu0 0
        %881 = vmatpush.bf16.xpose.msra.mxu0 0
        %882 = vmatpush.bf16.xpose.msra.mxu0 0
        %883 = vmatpush.bf16.xpose.msra.mxu0 0
        %884 = vmatpush.bf16.xpose.msra.mxu0 0
        %885 = vmatpush.bf16.xpose.msra.mxu0 0
        %886 = vmatpush.bf16.xpose.msra.mxu0 0
        %887 = vmatpush.bf16.xpose.msra.mxu0 %v878
        %888 = vmatmul.bf16.gmra.mxu0 %v875
        %v889 = vpop.f32.mrf.mxu0
        %v890 = vadd.f32 0.0, %v889
        %v891 = vpop.f32.mrf.mxu0
        %892 = vdwg.mxu0
        %v893 = vsel %vm873, %v890, -inf
        %894 = vmax.xlane.f32.xlu0 %v893
        %v895 = vpop.xlane.xlu0 %894
        %v896 = vsub.f32 %v890, %v895
        %v897 = vmul.f32 %v896, 1.442695
        %v898 = vpow.pop %v897
        %v899 = vsel %vm873, %v898, 0.0
        %900 = vadd.xlane.f32.xlu0 %v899
        %v901 = vpop.xlane.xlu0 %900
        %v902 = vrcp.pop %v901
        %v903 = vmul.f32 %v898, %v902
        %904 = vst.msk [vmem:[%s722] sm:$0xff] %vm873, %v903
        %v905 = vpack.c.bf16 %v903, %v903
        %v907 = vsel %vm873, %v905, 0
        %vm909 = vcmask 1043456
        %v911 = vsel %vm909, %v872, 0
        %913 = vmatpush.bf16.msra.mxu0 0
        %914 = vmatpush.bf16.msra.mxu0 0
        %915 = vmatpush.bf16.msra.mxu0 0
        %916 = vmatpush.bf16.msra.mxu0 0
        %917 = vmatpush.bf16.msra.mxu0 0
        %918 = vmatpush.bf16.msra.mxu0 0
        %919 = vmatpush.bf16.msra.mxu0 0
        %920 = vmatpush.bf16.msra.mxu0 %v911
        %921 = vmatmul.bf16.gmra.mxu0 %v907
        %v922 = vpop.f32.mrf.mxu0
        %v923 = vadd.f32 0.0, %v922
        %v924 = vpop.f32.mrf.mxu0
        %925 = vdwg.mxu0
        %v926 = vld [vmem:[#allocation2] sm:$0xff]
        %v927 = vpack.c.bf16 %v923, %v923
        %v928 = vld [vmem:[%s758] sm:$0xf]
        %v930 = vsel %vm873, %v927, 0
        %v933 = vsel %vm909, %v928, 0
        %935 = vmatpush.bf16.msra.mxu0 0
        %936 = vmatpush.bf16.msra.mxu0 0
        %937 = vmatpush.bf16.msra.mxu0 0
        %938 = vmatpush.bf16.msra.mxu0 0
        %939 = vmatpush.bf16.msra.mxu0 0
        %940 = vmatpush.bf16.msra.mxu0 0
        %941 = vmatpush.bf16.msra.mxu0 0
        %942 = vmatpush.bf16.msra.mxu0 %v933
        %943 = vmatmul.bf16.gmra.mxu0 %v930
        %v944 = vpop.f32.mrf.mxu0
        %v945 = vadd.f32 0.0, %v944
        %v946 = vpop.f32.mrf.mxu0
        %947 = vdwg.mxu0
        %v948 = vadd.f32 %v926, %v945
        %949 = vst.msk [vmem:[#allocation2] sm:$0xff] %vm787, %v948
        %p950 = scmp.eq.s32.totalorder %s42, 3
        // Predicated region
        $region97: #{tpu_custom_call.1} parent=91 // pred_check
          %p951 = pneg %p950
        $region98: #{tpu_custom_call.1} parent=91 // pred_check_branch
          %953 = sbr.rel (%p951) target = $region100
        $region99: #{tpu_custom_call.1} parent=91 // pred_region
          %v954 = vld [vmem:[%s730] sm:$0xff]
          %v955 = vld [vmem:[#allocation2] sm:$0xff]
          %v956 = vld [vmem:[%s9] sm:$0x1]
          %v958 = vperm.slane %v956, 0
          %v960 = vadd.f32 %v955, %v958
          %v961 = vunpack.c.l.bf16 %v760
          %v962 = vadd.f32 %v960, %v961
          %v963 = vsel %vm787, %v962, 0.0
          %964 = vadd.xlane.f32.xlu0 %v963
          %v965 = vpop.xlane.xlu0 %964
          %v966 = vrcp.pop 32.0
          %v967 = vmul.f32 32.0, %v966
          %v968 = vsub.f32 1.0, %v967
          %v969 = vmul.f32 %v966, %v968
          %v970 = vadd.f32 %v966, %v969
          %vm971 = vweird.f32 %v966
          %v972 = vsel %vm971, %v966, %v970
          %v973 = vmul.f32 %v965, %v972
          %v974 = vsub.f32 %v962, %v973
          %v975 = vmul.f32 %v974, %v974
          %v976 = vsel %vm787, %v975, 0.0
          %977 = vadd.xlane.f32.xlu0 %v976
          %v978 = vpop.xlane.xlu0 %977
          %v979 = vmul.f32 %v978, %v972
          %v980 = vadd.f32 %v979, 1e-05
          %v981 = vrsqrt.pop %v980
          %v982 = vmul.f32 %v981, %v980
          %v983 = vmul.f32 %v982, %v981
          %v984 = vmul.f32 0.5, %v983
          %v985 = vsub.f32 1.5, %v984
          %v986 = vmul.f32 %v981, %v985
          %vm987 = vweird.f32 %v980
          %vm988 = vweird.f32 %v981
          %vm989 = vmor %vm987, %vm988
          %v990 = vsel %vm989, %v981, %v986
          %v991 = vmul.f32 %v974, %v990
          %v992 = vld [vmem:[%s10] sm:$0x1]
          %v994 = vperm.slane %v992, 0
          %v996 = vmul.f32 %v991, %v994
          %v997 = vld [vmem:[%s11] sm:$0x1]
          %v999 = vperm.slane %v997, 0
          %v1001 = vadd.f32 %v996, %v999
          %1003 = vset.pattern.permute.xlu0 0
          %1004 = vperm.xlu0 %1003, %v954
          %v1005 = vpop.permute.xlu0 %1004
          %v1007 = vmul.f32 %v1001, %v1005
          %v1008 = vpack.c.bf16 %v1007, %v1007
          %v1009 = vld [vmem:[%s12] sm:$0xf]
          %v1010 = vld [vmem:[%s12 + $0x4] sm:$0xf]
          %v1011 = vld [vmem:[%s12 + $0x8] sm:$0xf]
          %v1012 = vld [vmem:[%s12 + $0xc] sm:$0xf]
          %v1013 = vld [vmem:[%s13] sm:$0x1]
          %v1015 = vperm.slane %v1013, 0
          %v1021 = vunpack.c.l.b16 %v1009
          %v1022 = vunpack.c.l.b16 %v1010
          %v1023 = vunpack.c.l.b16 %v1011
          %v1024 = vunpack.c.l.b16 %v1012
          %v1025 = vpack.c.b16 %v1022, %v1021
          %v1026 = vpack.c.b16 %v1024, %v1023
          %v1030 = vsel %vm787, %v1008, 0
          %1032 = vmatpush.bf16.msra.mxu0 0
          %1033 = vmatpush.bf16.msra.mxu0 0
          %1034 = vmatpush.bf16.msra.mxu0 0
          %1035 = vmatpush.bf16.msra.mxu0 0
          %1036 = vmatpush.bf16.msra.mxu0 0
          %1037 = vmatpush.bf16.msra.mxu0 0
          %1038 = vmatpush.bf16.msra.mxu0 %v1026
          %1039 = vmatpush.bf16.msra.mxu0 %v1025
          %1040 = vmatmul.bf16.gmra.mxu0 %v1030
          %v1041 = vpop.f32.mrf.mxu0
          %v1042 = vadd.f32 %v1015, %v1041
          %v1043 = vpop.f32.mrf.mxu0
          %1044 = vdwg.mxu0
          %v1045 = vmax.f32 %v1042, 0.0
          %v1046 = vpack.c.bf16 %v1045, %v1045
          %v1047 = vld [vmem:[%s14] sm:$0xf]
          %v1048 = vld [vmem:[%s14 + $0x4] sm:$0xf]
          %v1049 = vld [vmem:[%s14 + $0x8] sm:$0xf]
          %v1050 = vld [vmem:[%s14 + $0xc] sm:$0xf]
          %v1051 = vld [vmem:[%s14 + $0x10] sm:$0xf]
          %v1052 = vld [vmem:[%s14 + $0x14] sm:$0xf]
          %v1053 = vld [vmem:[%s14 + $0x18] sm:$0xf]
          %v1054 = vld [vmem:[%s14 + $0x1c] sm:$0xf]
          %v1055 = vld [vmem:[%s15] sm:$0x1]
          %v1057 = vperm.slane %v1055, 0
          %v1067 = vunpack.c.l.b16 %v1047
          %v1068 = vunpack.c.l.b16 %v1048
          %v1069 = vunpack.c.l.b16 %v1049
          %v1070 = vunpack.c.l.b16 %v1050
          %v1071 = vunpack.c.l.b16 %v1051
          %v1072 = vunpack.c.l.b16 %v1052
          %v1073 = vunpack.c.l.b16 %v1053
          %v1074 = vunpack.c.l.b16 %v1054
          %v1075 = vpack.c.b16 %v1068, %v1067
          %v1076 = vpack.c.b16 %v1070, %v1069
          %v1077 = vpack.c.b16 %v1072, %v1071
          %v1078 = vpack.c.b16 %v1074, %v1073
          %vm1083 = vcmask 523264
          %v1085 = vsel %vm1083, %v1046, 0
          %1087 = vmatpush.bf16.msra.mxu0 0
          %1088 = vmatpush.bf16.msra.mxu0 0
          %1089 = vmatpush.bf16.msra.mxu0 0
          %1090 = vmatpush.bf16.msra.mxu0 0
          %1091 = vmatpush.bf16.msra.mxu0 %v1078
          %1092 = vmatpush.bf16.msra.mxu0 %v1077
          %1093 = vmatpush.bf16.msra.mxu0 %v1076
          %1094 = vmatpush.bf16.msra.mxu0 %v1075
          %1095 = vmatmul.bf16.gmra.mxu0 %v1085
          %v1096 = vpop.f32.mrf.mxu0
          %v1097 = vadd.f32 %v1057, %v1096
          %v1098 = vpop.f32.mrf.mxu0
          %1099 = vdwg.mxu0
          %v1100 = vadd.f32 %v1097, %v1007
          %v1101 = vsel %vm787, %v1100, 0.0
          %1102 = vadd.xlane.f32.xlu0 %v1101
          %v1103 = vpop.xlane.xlu0 %1102
          %v1104 = vmul.f32 %v1103, %v972
          %v1105 = vsub.f32 %v1100, %v1104
          %v1106 = vmul.f32 %v1105, %v1105
          %v1107 = vsel %vm787, %v1106, 0.0
          %1108 = vadd.xlane.f32.xlu0 %v1107
          %v1109 = vpop.xlane.xlu0 %1108
          %v1110 = vmul.f32 %v1109, %v972
          %v1111 = vadd.f32 %v1110, 1e-05
          %v1112 = vrsqrt.pop %v1111
          %v1113 = vmul.f32 %v1112, %v1111
          %v1114 = vmul.f32 %v1113, %v1112
          %v1115 = vmul.f32 0.5, %v1114
          %v1116 = vsub.f32 1.5, %v1115
          %v1117 = vmul.f32 %v1112, %v1116
          %vm1118 = vweird.f32 %v1111
          %vm1119 = vweird.f32 %v1112
          %vm1120 = vmor %vm1118, %vm1119
          %v1121 = vsel %vm1120, %v1112, %v1117
          %v1122 = vmul.f32 %v1105, %v1121
          %v1123 = vld [vmem:[%s16] sm:$0x1]
          %v1125 = vperm.slane %v1123, 0
          %v1127 = vmul.f32 %v1122, %v1125
          %v1128 = vld [vmem:[%s17] sm:$0x1]
          %v1130 = vperm.slane %v1128, 0
          %v1132 = vadd.f32 %v1127, %v1130
          %v1133 = vmul.f32 %v1132, %v1005
          %1134 = vst.msk [vmem:[%s715] sm:$0xff] %vm787, %v1133
        $region100: #{tpu_custom_call.1} parent=91 // pred_fallthru
          _
        %s1135 = sand.u32 %s480, 1
        %s1136 = scalar_lea.sflag [#allocation4], %s1135
        %s1137 = sand.u32 %s480, 1
        %s1138 = smul.addr %s1137, 8
        %s1139 = scalar_lea.vmem [#allocation3], %s1138
        %s1140 = sand.u32 %s508, 1
        %s1141 = scalar_lea.sflag [#allocation6], %s1140
        %s1142 = sand.u32 %s508, 1
        %s1143 = smul.addr %s1142, 8
        %s1144 = scalar_lea.vmem [#allocation5], %s1143
        // Predicated region
        $region101: #{tpu_custom_call.1} parent=91 // pred_check
          %p1145 = pneg %p490
        $region102: #{tpu_custom_call.1} parent=91 // pred_check_branch
          %1147 = sbr.rel (%p1145) target = $region104
        $region103: #{tpu_custom_call.1} parent=91 // pred_region
          %1149 = vsyncadd %s1136, 0
          %s1150 = smul.addr %s41, 8
          %s1151 = scalar_lea.hbm %s18, %s1150
          %s1153 = sshll.u32 %s1139, 4
          %s1154 = int_to_ptr.vmem [resolvable:$true] %s1153
          %s1155 = sshll.u32 %s1151, 4
          %s1156 = int_to_ptr.hbm [resolvable:$true] %s1155
          %1158 = dma.vmem_to_hbm [thread:$0]  %s1154, 128, %s1156, %s1136
        $region104: #{tpu_custom_call.1} parent=91 // pred_fallthru
          _
        // Predicated region
        $region105: #{tpu_custom_call.1} parent=91 // pred_check
          %p1159 = pneg %p518
        $region106: #{tpu_custom_call.1} parent=91 // pred_check_branch
          %1161 = sbr.rel (%p1159) target = $region108
        $region107: #{tpu_custom_call.1} parent=91 // pred_region
          %1163 = vsyncadd %s1141, 0
          %s1164 = smul.addr %s42, 2
          %s1165 = sadd.s32 %s41, %s1164
          %s1166 = smul.addr %s1165, 8
          %s1167 = scalar_lea.hbm %s19, %s1166
          %s1169 = sshll.u32 %s1144, 4
          %s1170 = int_to_ptr.vmem [resolvable:$true] %s1169
          %s1171 = sshll.u32 %s1167, 4
          %s1172 = int_to_ptr.hbm [resolvable:$true] %s1171
          %1174 = dma.vmem_to_hbm [thread:$0]  %s1170, 128, %s1172, %s1141
        $region108: #{tpu_custom_call.1} parent=91 // pred_fallthru
          _
      $region92: #{tpu_custom_call.1} parent=5 // pred_fallthru
        _
      %p1175 = scmp.le.s32.totalorder 2, %s32
      // Predicated region
      $region109: #{tpu_custom_call.1} parent=5 // pred_check
        %p1176 = pneg %p1175
      $region110: #{tpu_custom_call.1} parent=5 // pred_check_branch
        %1178 = sbr.rel (%p1176) target = $region112
      $region111: #{tpu_custom_call.1} parent=5 // pred_region
        %s1179 = ssub.s32 %s32, 2
        // Predicated region
        $region113: #{tpu_custom_call.1} parent=111 // pred_check
          %p1180 = pneg %p496
        $region114: #{tpu_custom_call.1} parent=111 // pred_check_branch
          %1182 = sbr.rel (%p1180) target = $region116
        $region115: #{tpu_custom_call.1} parent=111 // pred_region
          %s1183 = sand.u32 %s481, 1
          %s1184 = scalar_lea.sflag [#allocation4], %s1183
          %s1185 = sand.u32 %s481, 1
          %s1186 = smul.addr %s1185, 8
          %s1187 = scalar_lea.vmem [#allocation3], %s1186
          %1189 = dma.done %s1184, 128
        $region116: #{tpu_custom_call.1} parent=111 // pred_fallthru
          _
        // Predicated region
        $region117: #{tpu_custom_call.1} parent=111 // pred_check
          %p1190 = pneg %p524
        $region118: #{tpu_custom_call.1} parent=111 // pred_check_branch
          %1192 = sbr.rel (%p1190) target = $region120
        $region119: #{tpu_custom_call.1} parent=111 // pred_region
          %s1193 = sand.u32 %s509, 1
          %s1194 = scalar_lea.sflag [#allocation6], %s1193
          %s1195 = sand.u32 %s509, 1
          %s1196 = smul.addr %s1195, 8
          %s1197 = scalar_lea.vmem [#allocation5], %s1196
          %1199 = dma.done %s1194, 128
        $region120: #{tpu_custom_call.1} parent=111 // pred_fallthru
          _
      $region112: #{tpu_custom_call.1} parent=5 // pred_fallthru
        _
    $region6: #{tpu_custom_call.1} parent=1 // loop_footer
      %s36 = sadd.s32 1, %s32
    $region7: #{tpu_custom_call.1} parent=1 // loop_footer_branch
      %31 = sbr.rel target = $region3
    $region8: #{tpu_custom_call.1} parent=1 // loop_exit
      _
    %1200 = vsyncpa [#allocation4], 1
    %s1201 = scalar_lea.sflag [#allocation4], 1
    %1202 = vsyncpa %s1201, 1
    %1203 = vsyncpa [#allocation6], 1
    %s1204 = scalar_lea.sflag [#allocation6], 1
    %1205 = vsyncpa %s1204, 1

</llo_original>
